<compile_context>
chip_gen: v7x
topology: tpu7x:2x2x1
jax: 0.10.0
libtpu: 0.0.40
codegen_flags: <defaults>
</compile_context>

<pallas_src>
import numpy as np
import jax
import jax.numpy as jnp
from jax.experimental import pallas as pl
from jax.experimental.pallas import tpu as pltpu


def _round_up(x, m):
    return ((x + m - 1) // m) * m


def _layout(p_x, b, p_y, b_y, b_pos, h, w):
    """Static sizes and packed-slab offsets shared by prepare_params and the
    forward wrapper (all 8-/128-aligned so in-kernel slices are free views)."""
    ho1, wo1 = h - 4, w - 4                 # conv1 (5x5, valid)
    hp1, wp1 = ho1 // 2, wo1 // 2           # MaxPool2d(2, 2)
    ho2, wo2 = hp1 - 1, wp1 - 1             # conv2 (2x2, valid)
    # MaxPool2d(2,2) of the conv2 map must be 1x1 so flatten gives 16 = fc1 in.
    assert 2 <= ho2 <= 3 and 2 <= wo2 <= 3, "input size incompatible with fc1(16, .)"
    q1 = hp1 * wp1                          # pool1 output positions
    q1c = q1 * 6
    xr = _round_up(p_x * b, 8)              # 8-aligned x-row segment
    byp = _round_up(b_y, 8)                 # 8-aligned rows per y patch
    n_img = xr + p_y * byp                  # image rows (per pool offset)
    m = min(b_y, b + b_pos)                 # torch.diagonal length
    vr = _round_up(m, 8)
    bp8 = _round_up(b_pos, 8)
    # f32 aux slab rows: [biases | Wpos | A_u | Cy]
    r_wpos = 8
    r_au = _round_up(r_wpos + 9, 8)
    r_cy = r_au + vr
    aux_rows = r_cy + vr
    aux_cols = _round_up(max(q1c, 120, 84, xr, bp8, 16), 128)
    # bf16 small-weight slab rows: [W2cat | Wfc1 | Wfc2]
    rf1 = _round_up(q1c, 8)
    rf2 = rf1 + 16
    ws_rows = _round_up(rf2 + 120, 8)
    ws_cols = 128
    return dict(hp1=hp1, wp1=wp1, q1=q1, q1c=q1c, xr=xr, byp=byp, n_img=n_img,
                m=m, vr=vr, bp8=bp8, p_y=p_y,
                r_wpos=r_wpos, r_au=r_au, r_cy=r_cy,
                aux_rows=aux_rows, aux_cols=aux_cols,
                rf1=rf1, rf2=rf2, ws_rows=ws_rows, ws_cols=ws_cols)


# -----------------------------------------------------------------------------
# Fused forward kernel (entire SelfieNet forward in one pallas_call)
# -----------------------------------------------------------------------------
def _make_selfie_kernel(lay):
    n = lay['n_img']; xr = lay['xr']; byp = lay['byp']; p_y = lay['p_y']
    m = lay['m']; vr = lay['vr']; bp8 = lay['bp8']; q1c = lay['q1c']
    rf1 = lay['rf1']; rf2 = lay['rf2']
    r_wpos = lay['r_wpos']; r_au = lay['r_au']; r_cy = lay['r_cy']

    def kernel(p_ref, w1_ref, wsm_ref, aux_ref, pos_ref, out_ref):
        f32, bf16 = jnp.float32, jnp.bfloat16

        # conv1 (Normalize folded) for all 4 pool1 offsets in ONE matmul; the
        # pool is a max over the 4 8-aligned row groups (bias is offset-
        # independent and ReLU is monotone, so bias+ReLU run once after it).
        h1 = jnp.dot(p_ref[...], w1_ref[...], preferred_element_type=f32)
        a1 = jnp.maximum(jnp.maximum(h1[0:n], h1[n:2 * n]),
                         jnp.maximum(h1[2 * n:3 * n], h1[3 * n:4 * n]))
        a1 = jnp.maximum(a1 + aux_ref[0:1, 0:q1c], 0.0).astype(bf16)   # (N, Q1*6)

        # conv2 (eval BN1 folded): the 4 pool2-surviving positions live in the
        # 4 16-wide column groups of one matmul; pool = max over the groups.
        h2 = jnp.dot(a1, wsm_ref[0:q1c, 0:64], preferred_element_type=f32)
        a2 = jnp.maximum(jnp.maximum(h2[:, 0:16], h2[:, 16:32]),
                         jnp.maximum(h2[:, 32:48], h2[:, 48:64]))
        a2 = jnp.maximum(a2 + aux_ref[1:2, 0:16], 0.0).astype(bf16)    # (N, 16)

        # fc1 (eval BN2 folded) -> ReLU ; fc2 -> ReLU
        hf = jnp.dot(a2, wsm_ref[rf1:rf1 + 16, 0:120],
                     preferred_element_type=f32) + aux_ref[2:3, 0:120]
        hf = jnp.maximum(hf, 0.0).astype(bf16)
        feats = jnp.dot(hf, wsm_ref[rf2:rf2 + 120, 0:84],
                        preferred_element_type=f32) + aux_ref[3:4, 0:84]
        feats = jnp.maximum(feats, 0.0)                                # (N, 84) f32

        # Position head: x-pos rows and (padded) y-pos rows in one small dot.
        pp = jnp.dot(pos_ref[...], aux_ref[r_wpos:r_wpos + 9, 0:84],
                     preferred_element_type=f32) + aux_ref[4:5, 0:84]
        posx = pp[0:xr]                                # pos(x_pos), no ReLU
        ypp = jnp.maximum(pp[xr:xr + bp8], 0.0)        # relu(pos(y_pos))

        # v = cat([sum_p (x_feats + pos_x), relu(pos(y_pos))]); rows >= m zero.
        v = (jnp.dot(aux_ref[r_au:r_au + vr, 0:xr], feats[0:xr] + posx,
                     preferred_element_type=f32)
             + jnp.dot(aux_ref[r_cy:r_cy + vr, 0:bp8], ypp,
                       preferred_element_type=f32))                    # (vr, 84)

        # scores^T[i, j] = patch_processing(y_img_j)[i] . v[i]
        col = jax.lax.broadcasted_iota(jnp.int32, (vr, p_y), 1)
        row = jax.lax.broadcasted_iota(jnp.int32, (vr, p_y), 0)
        st = jnp.zeros((vr, p_y), f32)
        for j in range(p_y):
            blk = feats[xr + j * byp: xr + j * byp + vr, :]   # 8-aligned view
            sj = jnp.sum(blk * v, axis=1, keepdims=True)      # (vr, 1)
            st = jnp.where(col == j, sj, st)

        # softmax over the m valid rows == torch softmax(scores, dim=1) then .T
        st = jnp.where(row < m, st, jnp.float32(-1e30))
        st = st - jnp.max(st, axis=0, keepdims=True)
        e = jnp.exp(st)
        sm = e / jnp.sum(e, axis=0, keepdims=True)
        out_ref[...] = sm[0:m, :].astype(out_ref.dtype)

    return kernel


# -----------------------------------------------------------------------------
# Deterministic synthetic parameters (shapes match the PyTorch module)
# -----------------------------------------------------------------------------
def init_raw_params(seed=0):
    rng = np.random.default_rng(seed)

    def n(*shape, scale=1.0):
        return (scale * rng.standard_normal(shape)).astype(np.float32)

    return {
        'conv1_w': n(5, 5, 3, 6, scale=np.sqrt(2.0 / 75.0)),
        'conv1_b': n(6, scale=0.05),
        'bn1_g': (1.0 + 0.1 * rng.standard_normal(6)).astype(np.float32),
        'bn1_b': n(6, scale=0.1),
        'bn1_m': n(6, scale=0.1),
        'bn1_v': rng.uniform(0.5, 1.5, 6).astype(np.float32),
        'conv2_w': n(2, 2, 6, 16, scale=np.sqrt(2.0 / 24.0)),
        'conv2_b': n(16, scale=0.05),
        'bn2_g': (1.0 + 0.1 * rng.standard_normal(16)).astype(np.float32),
        'bn2_b': n(16, scale=0.1),
        'bn2_m': n(16, scale=0.1),
        'bn2_v': rng.uniform(0.5, 1.5, 16).astype(np.float32),
        'fc1_w': n(16, 120, scale=np.sqrt(2.0 / 16.0)),
        'fc1_b': n(120, scale=0.05),
        'fc2_w': n(120, 84, scale=np.sqrt(2.0 / 120.0)),
        'fc2_b': n(84, scale=0.05),
        'pos_w': n(9, 84, scale=np.sqrt(2.0 / 9.0)),
        'pos_b': n(84, scale=0.05),
        # fc3 (84 -> 3) exists in the module but is unused by forward().
    }


def prepare_params(raw, p_x, b, p_y, b_y, b_pos, h, w):
    """Fold Normalize->conv1, BN1->conv2, BN2->fc1 (eval-mode BN) and pack all
    constant operands into 3 slabs consumed by the kernel."""
    lay = _layout(p_x, b, p_y, b_y, b_pos, h, w)
    eps = 1e-5
    q1, wp1, q1c = lay['q1'], lay['wp1'], lay['q1c']

    # Normalize((.5,.5,.5),(.5,.5,.5)):  x -> 2x - 1, folded into conv1.
    w1 = 2.0 * raw['conv1_w']                                  # (5,5,3,6)
    b1 = raw['conv1_b'] - raw['conv1_w'].sum(axis=(0, 1, 2))
    # Feature order (c, kh, kw) to match lax.conv_general_dilated_patches.
    w1m = np.transpose(w1, (2, 0, 1, 3)).reshape(75, 6)
    w1blk = np.zeros((q1 * 75, q1c), np.float32)
    b1blk = np.zeros((q1c,), np.float32)
    for q in range(q1):
        w1blk[q * 75:(q + 1) * 75, q * 6:(q + 1) * 6] = w1m
        b1blk[q * 6:(q + 1) * 6] = b1

    # BN1 folded into conv2; the 4 pool2-surviving conv2 positions go to the
    # 4 16-wide output column groups of one (Q1*6, 64) matrix.
    s1 = raw['bn1_g'] / np.sqrt(raw['bn1_v'] + eps)
    t1 = raw['bn1_b'] - raw['bn1_m'] * s1
    w2 = raw['conv2_w'] * s1[None, None, :, None]              # (2,2,6,16)
    b2 = raw['conv2_b'] + (raw['conv2_w'] * t1[None, None, :, None]).sum(axis=(0, 1, 2))
    w2cat = np.zeros((q1c, 64), np.float32)
    for oh in range(2):
        for ow in range(2):
            g = (oh * 2 + ow) * 16
            for kh in range(2):
                for kw in range(2):
                    r0 = ((oh + kh) * wp1 + (ow + kw)) * 6
                    w2cat[r0:r0 + 6, g:g + 16] = w2[kh, kw]

    # BN2 folded into fc1 (pool2 output is 1x1x16 so flatten index == channel).
    s2 = raw['bn2_g'] / np.sqrt(raw['bn2_v'] + eps)
    t2 = raw['bn2_b'] - raw['bn2_m'] * s2
    wfc1 = raw['fc1_w'] * s2[:, None]
    bfc1 = raw['fc1_b'] + t2 @ raw['fc1_w']

    # Packed bf16 small-weight slab: conv2 | fc1 | fc2.
    ws = np.zeros((lay['ws_rows'], lay['ws_cols']), np.float32)
    ws[0:q1c, 0:64] = w2cat
    ws[lay['rf1']:lay['rf1'] + 16, 0:120] = wfc1
    ws[lay['rf2']:lay['rf2'] + 120, 0:84] = raw['fc2_w']

    # Packed f32 slab: biases, pos weights, and the head selection matrices
    # (A_u sums the x patches per batch row; Cy scatters relu(pos(y_pos))).
    aux = np.zeros((lay['aux_rows'], lay['aux_cols']), np.float32)
    aux[0, 0:q1c] = b1blk
    aux[1, 0:16] = b2
    aux[2, 0:120] = bfc1
    aux[3, 0:84] = raw['fc2_b']
    aux[4, 0:84] = raw['pos_b']
    aux[lay['r_wpos']:lay['r_wpos'] + 9, 0:84] = raw['pos_w']
    m = lay['m']
    for i in range(min(m, b)):
        for p in range(p_x):
            aux[lay['r_au'] + i, p * b + i] = 1.0
    for i in range(b, m):
        aux[lay['r_cy'] + i, i - b] = 1.0

    return {
        'W1blk': jnp.asarray(w1blk, jnp.bfloat16),
        'Wsmall': jnp.asarray(ws, jnp.bfloat16),
        'Aux': jnp.asarray(aux, jnp.float32),
    }


# -----------------------------------------------------------------------------
# Forward pass
# -----------------------------------------------------------------------------
@jax.jit
def selfie_forward(params, x_imgs, x_pos, y_imgs, y_pos):
    """x_imgs: (P_x, B, 3, H, W), x_pos: (P_x, B, 9),
       y_imgs: (P_y, B_y, 3, H, W), y_pos: (B_pos, 9).
       Returns softmax(scores, dim=1).T with shape (min(B_y, B+B_pos), P_y)."""
    p_x, b, c, h, w = x_imgs.shape
    p_y, b_y = y_imgs.shape[0], y_imgs.shape[1]
    b_pos = y_pos.shape[0]
    assert c == 3
    lay = _layout(p_x, b, p_y, b_y, b_pos, h, w)
    xr, byp, n = lay['xr'], lay['byp'], lay['n_img']
    hp1, wp1, q1 = lay['hp1'], lay['wp1'], lay['q1']

    # Image rows -> one NHWC bf16 block (x patches first, then each y patch);
    # bf16 up-front halves every im2col intermediate and the kernel DMA.
    xb = jnp.transpose(x_imgs.astype(jnp.bfloat16).reshape(p_x * b, c, h, w),
                       (0, 2, 3, 1))
    xb = jnp.pad(xb, ((0, xr - p_x * b), (0, 0), (0, 0), (0, 0)))
    yb = jnp.transpose(y_imgs.astype(jnp.bfloat16).reshape(p_y * b_y, c, h, w),
                       (0, 2, 3, 1)).reshape(p_y, b_y, h, w, c)
    yb = jnp.pad(yb, ((0, 0), (0, byp - b_y), (0, 0), (0, 0), (0, 0)))
    x_all = jnp.concatenate([xb, yb.reshape(p_y * byp, h, w, c)], axis=0)

    # im2col for conv1 in ONE XLA op (feature order = (c, kh, kw)); the 4 pool1
    # window offsets become 4 row groups of a single (4N, Q1*75) bf16 slab so
    # the kernel needs only one conv1 matmul and free row-slice pooling.
    pat = jax.lax.conv_general_dilated_patches(
        x_all, filter_shape=(5, 5), window_strides=(1, 1), padding='VALID',
        dimension_numbers=('NHWC', 'HWIO', 'NHWC'))           # (N, Ho1, Wo1, 75)
    if (h - 4) != 2 * hp1 or (w - 4) != 2 * wp1:
        pat = pat[:, :2 * hp1, :2 * wp1, :]
    pat = pat.reshape(n, hp1, 2, wp1, 2, 75)
    pat = jnp.transpose(pat, (2, 4, 0, 1, 3, 5))              # (2, 2, N, hp1, wp1, 75)
    p_slab = pat.reshape(4 * n, q1 * 75)                      # bf16

    # Position inputs: x rows then (padded) y_pos rows -> one small f32 block.
    xpos = jnp.pad(x_pos.reshape(p_x * b, 9).astype(jnp.float32),
                   ((0, xr - p_x * b), (0, 0)))
    ypos = jnp.pad(y_pos.astype(jnp.float32), ((0, lay['bp8'] - b_pos), (0, 0)))
    posall = jnp.concatenate([xpos, ypos], axis=0)            # (xr + bp8, 9)

    vmem = pl.BlockSpec(memory_space=pltpu.MemorySpace.VMEM)
    out = pl.pallas_call(
        _make_selfie_kernel(lay),
        out_shape=jax.ShapeDtypeStruct((lay['m'], p_y), jnp.float32),
        in_specs=[vmem] * 5,
        out_specs=vmem,
        compiler_params=pltpu.CompilerParams(
            allow_input_fusion=[True, True, True, True, True]),
    )(p_slab, params['W1blk'], params['Wsmall'], params['Aux'], posall)
    return out


if __name__ == "__main__":
    key = jax.random.PRNGKey(0)
    k1, k2, k3, k4 = jax.random.split(key, 4)
    P_x, B = 3, 2           # 3 context patches, batch 2
    P_y, B_y = 5, 4         # 5 query patches, batch 4
    B_pos = 2               # rows of y_pos (B + B_pos == B_y -> full diagonal)
    H = W = 12              # small spatial size compatible with fc1(16, 120)

    x_imgs = jax.random.uniform(k1, (P_x, B, 3, H, W), jnp.float32)
    y_imgs = jax.random.uniform(k2, (P_y, B_y, 3, H, W), jnp.float32)
    x_pos = jax.random.uniform(k3, (P_x, B, 9), jnp.float32)
    y_pos = jax.random.uniform(k4, (B_pos, 9), jnp.float32)

    params = prepare_params(init_raw_params(0), P_x, B, P_y, B_y, B_pos, H, W)
    out = selfie_forward(params, x_imgs, x_pos, y_imgs, y_pos)
    out = jax.block_until_ready(out)

    assert out.shape == (min(B_y, B + B_pos), P_y)
    assert bool(jnp.all(jnp.isfinite(out)))
    # Each column is a softmax over the diagonal index -> sums to 1.
    assert bool(jnp.all(jnp.abs(jnp.sum(out, axis=0) - 1.0) < 1e-3))
    print("KERNEL_OK")
</pallas_src>

<mosaic_0001>
module attributes {stable_mosaic.version = 11 : i64} {
  func.func @kernel(%arg0: memref<192x1200xbf16, #tpu.memory_space<vmem>>, %arg1: memref<1200x96xbf16, #tpu.memory_space<vmem>>, %arg2: memref<232x128xbf16, #tpu.memory_space<vmem>>, %arg3: memref<40x128xf32, #tpu.memory_space<vmem>>, %arg4: memref<16x9xf32, #tpu.memory_space<vmem>>, %arg5: memref<4x5xf32, #tpu.memory_space<vmem>>) attributes {dimension_semantics = [], scalar_prefetch = 0 : i64, scratch_operands = 0 : i64, tpu.core_type = #tpu.core_type<tc>} {
    %c0 = arith.constant 0 : index
    %c0_0 = arith.constant 0 : index
    %0 = vector.load %arg0[%c0, %c0_0] : memref<192x1200xbf16, #tpu.memory_space<vmem>>, vector<192x1200xbf16>
    %c0_1 = arith.constant 0 : index
    %c0_2 = arith.constant 0 : index
    %1 = vector.load %arg1[%c0_1, %c0_2] : memref<1200x96xbf16, #tpu.memory_space<vmem>>, vector<1200x96xbf16>
    %cst = arith.constant dense<0.000000e+00> : vector<192x96xf32>
    %2 = tpu.matmul %0, %1, %cst {dimension_numbers = #tpu.dot_dimension_numbers<[1], [0], [0], [1], [0, 0, 1, 1], [], []>} : vector<192x1200xbf16>, vector<1200x96xbf16>, vector<192x96xf32> -> vector<192x96xf32>
    %3 = vector.extract_strided_slice %2 {offsets = [0, 0], sizes = [48, 96], strides = [1, 1]} : vector<192x96xf32> to vector<48x96xf32>
    %4 = vector.extract_strided_slice %2 {offsets = [48, 0], sizes = [48, 96], strides = [1, 1]} : vector<192x96xf32> to vector<48x96xf32>
    %5 = arith.maximumf %3, %4 : vector<48x96xf32>
    %6 = vector.extract_strided_slice %2 {offsets = [96, 0], sizes = [48, 96], strides = [1, 1]} : vector<192x96xf32> to vector<48x96xf32>
    %7 = vector.extract_strided_slice %2 {offsets = [144, 0], sizes = [48, 96], strides = [1, 1]} : vector<192x96xf32> to vector<48x96xf32>
    %8 = arith.maximumf %6, %7 : vector<48x96xf32>
    %9 = arith.maximumf %5, %8 : vector<48x96xf32>
    %c0_3 = arith.constant 0 : index
    %c0_4 = arith.constant 0 : index
    %10 = vector.load %arg3[%c0_3, %c0_4] : memref<40x128xf32, #tpu.memory_space<vmem>>, vector<1x96xf32>
    %11 = vector.broadcast %10 : vector<1x96xf32> to vector<48x96xf32>
    %12 = arith.addf %9, %11 : vector<48x96xf32>
    %cst_5 = arith.constant 0.000000e+00 : f32
    %13 = vector.broadcast %cst_5 : f32 to vector<48x96xf32>
    %14 = arith.maximumf %12, %13 : vector<48x96xf32>
    %15 = arith.truncf %14 : vector<48x96xf32> to vector<48x96xbf16>
    %c0_6 = arith.constant 0 : index
    %c0_7 = arith.constant 0 : index
    %16 = vector.load %arg2[%c0_6, %c0_7] : memref<232x128xbf16, #tpu.memory_space<vmem>>, vector<96x64xbf16>
    %cst_8 = arith.constant dense<0.000000e+00> : vector<48x64xf32>
    %17 = tpu.matmul %15, %16, %cst_8 {dimension_numbers = #tpu.dot_dimension_numbers<[1], [0], [0], [1], [0, 0, 1, 1], [], []>} : vector<48x96xbf16>, vector<96x64xbf16>, vector<48x64xf32> -> vector<48x64xf32>
    %18 = vector.extract_strided_slice %17 {offsets = [0, 0], sizes = [48, 16], strides = [1, 1]} : vector<48x64xf32> to vector<48x16xf32>
    %19 = vector.extract_strided_slice %17 {offsets = [0, 16], sizes = [48, 16], strides = [1, 1]} : vector<48x64xf32> to vector<48x16xf32>
    %20 = arith.maximumf %18, %19 : vector<48x16xf32>
    %21 = vector.extract_strided_slice %17 {offsets = [0, 32], sizes = [48, 16], strides = [1, 1]} : vector<48x64xf32> to vector<48x16xf32>
    %22 = vector.extract_strided_slice %17 {offsets = [0, 48], sizes = [48, 16], strides = [1, 1]} : vector<48x64xf32> to vector<48x16xf32>
    %23 = arith.maximumf %21, %22 : vector<48x16xf32>
    %24 = arith.maximumf %20, %23 : vector<48x16xf32>
    %c1 = arith.constant 1 : index
    %c0_9 = arith.constant 0 : index
    %25 = vector.load %arg3[%c1, %c0_9] : memref<40x128xf32, #tpu.memory_space<vmem>>, vector<1x16xf32>
    %26 = vector.broadcast %25 : vector<1x16xf32> to vector<48x16xf32>
    %27 = arith.addf %24, %26 : vector<48x16xf32>
    %cst_10 = arith.constant 0.000000e+00 : f32
    %28 = vector.broadcast %cst_10 : f32 to vector<48x16xf32>
    %29 = arith.maximumf %27, %28 : vector<48x16xf32>
    %30 = arith.truncf %29 : vector<48x16xf32> to vector<48x16xbf16>
    %c96 = arith.constant 96 : index
    %c0_11 = arith.constant 0 : index
    %31 = vector.load %arg2[%c96, %c0_11] : memref<232x128xbf16, #tpu.memory_space<vmem>>, vector<16x120xbf16>
    %cst_12 = arith.constant dense<0.000000e+00> : vector<48x120xf32>
    %32 = tpu.matmul %30, %31, %cst_12 {dimension_numbers = #tpu.dot_dimension_numbers<[1], [0], [0], [1], [0, 0, 1, 1], [], []>} : vector<48x16xbf16>, vector<16x120xbf16>, vector<48x120xf32> -> vector<48x120xf32>
    %c2 = arith.constant 2 : index
    %c0_13 = arith.constant 0 : index
    %33 = vector.load %arg3[%c2, %c0_13] : memref<40x128xf32, #tpu.memory_space<vmem>>, vector<1x120xf32>
    %34 = vector.broadcast %33 : vector<1x120xf32> to vector<48x120xf32>
    %35 = arith.addf %32, %34 : vector<48x120xf32>
    %cst_14 = arith.constant 0.000000e+00 : f32
    %36 = vector.broadcast %cst_14 : f32 to vector<48x120xf32>
    %37 = arith.maximumf %35, %36 : vector<48x120xf32>
    %38 = arith.truncf %37 : vector<48x120xf32> to vector<48x120xbf16>
    %c112 = arith.constant 112 : index
    %c0_15 = arith.constant 0 : index
    %39 = vector.load %arg2[%c112, %c0_15] : memref<232x128xbf16, #tpu.memory_space<vmem>>, vector<120x84xbf16>
    %cst_16 = arith.constant dense<0.000000e+00> : vector<48x84xf32>
    %40 = tpu.matmul %38, %39, %cst_16 {dimension_numbers = #tpu.dot_dimension_numbers<[1], [0], [0], [1], [0, 0, 1, 1], [], []>} : vector<48x120xbf16>, vector<120x84xbf16>, vector<48x84xf32> -> vector<48x84xf32>
    %c3 = arith.constant 3 : index
    %c0_17 = arith.constant 0 : index
    %41 = vector.load %arg3[%c3, %c0_17] : memref<40x128xf32, #tpu.memory_space<vmem>>, vector<1x84xf32>
    %42 = vector.broadcast %41 : vector<1x84xf32> to vector<48x84xf32>
    %43 = arith.addf %40, %42 : vector<48x84xf32>
    %cst_18 = arith.constant 0.000000e+00 : f32
    %44 = vector.broadcast %cst_18 : f32 to vector<48x84xf32>
    %45 = arith.maximumf %43, %44 : vector<48x84xf32>
    %c0_19 = arith.constant 0 : index
    %c0_20 = arith.constant 0 : index
    %46 = vector.load %arg4[%c0_19, %c0_20] : memref<16x9xf32, #tpu.memory_space<vmem>>, vector<16x9xf32>
    %c8 = arith.constant 8 : index
    %c0_21 = arith.constant 0 : index
    %47 = vector.load %arg3[%c8, %c0_21] : memref<40x128xf32, #tpu.memory_space<vmem>>, vector<9x84xf32>
    %cst_22 = arith.constant dense<0.000000e+00> : vector<16x84xf32>
    %48 = tpu.matmul %46, %47, %cst_22 {dimension_numbers = #tpu.dot_dimension_numbers<[1], [0], [0], [1], [0, 0, 1, 1], [], []>} : vector<16x9xf32>, vector<9x84xf32>, vector<16x84xf32> -> vector<16x84xf32>
    %c4 = arith.constant 4 : index
    %c0_23 = arith.constant 0 : index
    %49 = vector.load %arg3[%c4, %c0_23] : memref<40x128xf32, #tpu.memory_space<vmem>>, vector<1x84xf32>
    %50 = vector.broadcast %49 : vector<1x84xf32> to vector<16x84xf32>
    %51 = arith.addf %48, %50 : vector<16x84xf32>
    %52 = vector.extract_strided_slice %51 {offsets = [0, 0], sizes = [8, 84], strides = [1, 1]} : vector<16x84xf32> to vector<8x84xf32>
    %53 = vector.extract_strided_slice %51 {offsets = [8, 0], sizes = [8, 84], strides = [1, 1]} : vector<16x84xf32> to vector<8x84xf32>
    %cst_24 = arith.constant 0.000000e+00 : f32
    %54 = vector.broadcast %cst_24 : f32 to vector<8x84xf32>
    %55 = arith.maximumf %53, %54 : vector<8x84xf32>
    %c24 = arith.constant 24 : index
    %c0_25 = arith.constant 0 : index
    %56 = vector.load %arg3[%c24, %c0_25] : memref<40x128xf32, #tpu.memory_space<vmem>>, vector<8x8xf32>
    %57 = vector.extract_strided_slice %45 {offsets = [0, 0], sizes = [8, 84], strides = [1, 1]} : vector<48x84xf32> to vector<8x84xf32>
    %58 = arith.addf %57, %52 : vector<8x84xf32>
    %cst_26 = arith.constant dense<0.000000e+00> : vector<8x84xf32>
    %59 = tpu.matmul %56, %58, %cst_26 {dimension_numbers = #tpu.dot_dimension_numbers<[1], [0], [0], [1], [0, 0, 1, 1], [], []>} : vector<8x8xf32>, vector<8x84xf32>, vector<8x84xf32> -> vector<8x84xf32>
    %c32 = arith.constant 32 : index
    %c0_27 = arith.constant 0 : index
    %60 = vector.load %arg3[%c32, %c0_27] : memref<40x128xf32, #tpu.memory_space<vmem>>, vector<8x8xf32>
    %cst_28 = arith.constant dense<0.000000e+00> : vector<8x84xf32>
    %61 = tpu.matmul %60, %55, %cst_28 {dimension_numbers = #tpu.dot_dimension_numbers<[1], [0], [0], [1], [0, 0, 1, 1], [], []>} : vector<8x8xf32>, vector<8x84xf32>, vector<8x84xf32> -> vector<8x84xf32>
    %62 = arith.addf %59, %61 : vector<8x84xf32>
    %63 = tpu.iota {dimensions = array<i32: 1>} : vector<8x5xi32>
    %64 = tpu.iota {dimensions = array<i32: 0>} : vector<8x5xi32>
    %cst_29 = arith.constant 0.000000e+00 : f32
    %65 = vector.broadcast %cst_29 : f32 to vector<8x5xf32>
    %66 = vector.extract_strided_slice %45 {offsets = [8, 0], sizes = [8, 84], strides = [1, 1]} : vector<48x84xf32> to vector<8x84xf32>
    %67 = arith.mulf %66, %62 : vector<8x84xf32>
    %cst_30 = arith.constant dense<0.000000e+00> : vector<8xf32>
    %68 = vector.multi_reduction <add>, %67, %cst_30 [1] : vector<8x84xf32> to vector<8xf32>
    %69 = vector.shape_cast %68 : vector<8xf32> to vector<8x1xf32>
    %c0_i32 = arith.constant 0 : i32
    %70 = vector.broadcast %c0_i32 : i32 to vector<8x5xi32>
    %71 = arith.cmpi eq, %63, %70 : vector<8x5xi32>
    %72 = vector.shape_cast %69 : vector<8x1xf32> to vector<8x1xf32>
    %73 = vector.broadcast %72 : vector<8x1xf32> to vector<8x5xf32>
    %74 = arith.select %71, %73, %65 : vector<8x5xi1>, vector<8x5xf32>
    %75 = vector.extract_strided_slice %45 {offsets = [16, 0], sizes = [8, 84], strides = [1, 1]} : vector<48x84xf32> to vector<8x84xf32>
    %76 = arith.mulf %75, %62 : vector<8x84xf32>
    %cst_31 = arith.constant dense<0.000000e+00> : vector<8xf32>
    %77 = vector.multi_reduction <add>, %76, %cst_31 [1] : vector<8x84xf32> to vector<8xf32>
    %78 = vector.shape_cast %77 : vector<8xf32> to vector<8x1xf32>
    %c1_i32 = arith.constant 1 : i32
    %79 = vector.broadcast %c1_i32 : i32 to vector<8x5xi32>
    %80 = arith.cmpi eq, %63, %79 : vector<8x5xi32>
    %81 = vector.shape_cast %78 : vector<8x1xf32> to vector<8x1xf32>
    %82 = vector.broadcast %81 : vector<8x1xf32> to vector<8x5xf32>
    %83 = arith.select %80, %82, %74 : vector<8x5xi1>, vector<8x5xf32>
    %84 = vector.extract_strided_slice %45 {offsets = [24, 0], sizes = [8, 84], strides = [1, 1]} : vector<48x84xf32> to vector<8x84xf32>
    %85 = arith.mulf %84, %62 : vector<8x84xf32>
    %cst_32 = arith.constant dense<0.000000e+00> : vector<8xf32>
    %86 = vector.multi_reduction <add>, %85, %cst_32 [1] : vector<8x84xf32> to vector<8xf32>
    %87 = vector.shape_cast %86 : vector<8xf32> to vector<8x1xf32>
    %c2_i32 = arith.constant 2 : i32
    %88 = vector.broadcast %c2_i32 : i32 to vector<8x5xi32>
    %89 = arith.cmpi eq, %63, %88 : vector<8x5xi32>
    %90 = vector.shape_cast %87 : vector<8x1xf32> to vector<8x1xf32>
    %91 = vector.broadcast %90 : vector<8x1xf32> to vector<8x5xf32>
    %92 = arith.select %89, %91, %83 : vector<8x5xi1>, vector<8x5xf32>
    %93 = vector.extract_strided_slice %45 {offsets = [32, 0], sizes = [8, 84], strides = [1, 1]} : vector<48x84xf32> to vector<8x84xf32>
    %94 = arith.mulf %93, %62 : vector<8x84xf32>
    %cst_33 = arith.constant dense<0.000000e+00> : vector<8xf32>
    %95 = vector.multi_reduction <add>, %94, %cst_33 [1] : vector<8x84xf32> to vector<8xf32>
    %96 = vector.shape_cast %95 : vector<8xf32> to vector<8x1xf32>
    %c3_i32 = arith.constant 3 : i32
    %97 = vector.broadcast %c3_i32 : i32 to vector<8x5xi32>
    %98 = arith.cmpi eq, %63, %97 : vector<8x5xi32>
    %99 = vector.shape_cast %96 : vector<8x1xf32> to vector<8x1xf32>
    %100 = vector.broadcast %99 : vector<8x1xf32> to vector<8x5xf32>
    %101 = arith.select %98, %100, %92 : vector<8x5xi1>, vector<8x5xf32>
    %102 = vector.extract_strided_slice %45 {offsets = [40, 0], sizes = [8, 84], strides = [1, 1]} : vector<48x84xf32> to vector<8x84xf32>
    %103 = arith.mulf %102, %62 : vector<8x84xf32>
    %cst_34 = arith.constant dense<0.000000e+00> : vector<8xf32>
    %104 = vector.multi_reduction <add>, %103, %cst_34 [1] : vector<8x84xf32> to vector<8xf32>
    %105 = vector.shape_cast %104 : vector<8xf32> to vector<8x1xf32>
    %c4_i32 = arith.constant 4 : i32
    %106 = vector.broadcast %c4_i32 : i32 to vector<8x5xi32>
    %107 = arith.cmpi eq, %63, %106 : vector<8x5xi32>
    %108 = vector.shape_cast %105 : vector<8x1xf32> to vector<8x1xf32>
    %109 = vector.broadcast %108 : vector<8x1xf32> to vector<8x5xf32>
    %110 = arith.select %107, %109, %101 : vector<8x5xi1>, vector<8x5xf32>
    %c4_i32_35 = arith.constant 4 : i32
    %111 = vector.broadcast %c4_i32_35 : i32 to vector<8x5xi32>
    %112 = arith.cmpi slt, %64, %111 : vector<8x5xi32>
    %cst_36 = arith.constant -1.000000e+30 : f32
    %113 = vector.broadcast %cst_36 : f32 to vector<8x5xf32>
    %114 = arith.select %112, %110, %113 : vector<8x5xi1>, vector<8x5xf32>
    %cst_37 = arith.constant dense<0xFF800000> : vector<5xf32>
    %115 = vector.multi_reduction <maximumf>, %114, %cst_37 [0] : vector<8x5xf32> to vector<5xf32>
    %116 = vector.shape_cast %115 : vector<5xf32> to vector<1x5xf32>
    %117 = vector.broadcast %116 : vector<1x5xf32> to vector<8x5xf32>
    %118 = arith.subf %114, %117 : vector<8x5xf32>
    %119 = math.exp %118 : vector<8x5xf32>
    %cst_38 = arith.constant dense<0.000000e+00> : vector<5xf32>
    %120 = vector.multi_reduction <add>, %119, %cst_38 [0] : vector<8x5xf32> to vector<5xf32>
    %121 = vector.shape_cast %120 : vector<5xf32> to vector<1x5xf32>
    %122 = vector.broadcast %121 : vector<1x5xf32> to vector<8x5xf32>
    %123 = arith.divf %119, %122 : vector<8x5xf32>
    %124 = vector.extract_strided_slice %123 {offsets = [0, 0], sizes = [4, 5], strides = [1, 1]} : vector<8x5xf32> to vector<4x5xf32>
    %c0_39 = arith.constant 0 : index
    %c0_40 = arith.constant 0 : index
    %125 = vector.load %arg5[%c0_39, %c0_40] : memref<4x5xf32, #tpu.memory_space<vmem>>, vector<4x5xf32>
    tpu.vector_store %arg5[%c0_39, %c0_40], %124 {strides = array<i32>} : memref<4x5xf32, #tpu.memory_space<vmem>>, vector<4x5xf32>,
    return
  }
}

</mosaic_0001>

<llo_original>
// kernel: selfie_forward.2
$region0: #{selfie_forward.2}
  #allocation0 [shape = 'u32[]', space=smem, size = 0x4, offset = 0x4, fixed_abs, tag = 'smem constant byte address 0x4 - core index']
  #allocation1 [shape = 'u32[144,128]{1,0:T(1,128)}', space=vmem, size = 0x12000, scoped, tag = 'internal scratch']
  #allocation2 [shape = 'u32[2048]{0}', space=vmem, size = 0x2000, scoped, tag = 'scoped memory for selfie_forward.2']
  #allocation3 [shape = 'u32[2048]{0}', space=vmem, size = 0x2000, scoped, tag = 'scoped memory for selfie_forward.2']
  #allocation4 [shape = 'u32[2048]{0}', space=vmem, size = 0x2000, scoped, tag = 'scoped memory for selfie_forward.2']
  #allocation5 [shape = 'u32[2048]{0}', space=vmem, size = 0x2000, scoped, tag = 'scoped memory for selfie_forward.2']
  #allocation6 [shape = 'u32[2048]{0}', space=vmem, size = 0x2000, scoped, tag = 'scoped memory for selfie_forward.2']
  #allocation7 [shape = 'u32[2048]{0}', space=vmem, size = 0x2000, scoped, tag = 'scoped memory for selfie_forward.2']
  #allocation8 [shape = 'u32[2048]{0}', space=vmem, size = 0x2000, scoped, tag = 'scoped memory for selfie_forward.2']
  #allocation9 [shape = 'u32[2048]{0}', space=vmem, size = 0x2000, scoped, tag = 'scoped memory for selfie_forward.2']
  #allocation10 [shape = 'u32[2048]{0}', space=vmem, size = 0x2000, scoped, tag = 'scoped memory for selfie_forward.2']
  #allocation11 [shape = 'u32[2048]{0}', space=vmem, size = 0x2000, scoped, tag = 'scoped memory for selfie_forward.2']
  %s0 = inlined_call_operand.vmem [shape: bf16[192,1200], index: 0, kind: input, shape index: {}]
  %s1 = inlined_call_operand.vmem [shape: bf16[1200,96], index: 1, kind: input, shape index: {}]
  %s2 = inlined_call_operand.vmem [shape: bf16[232,128], index: 2, kind: input, shape index: {}]
  %s3 = inlined_call_operand.vmem [shape: f32[40,128], index: 3, kind: input, shape index: {}]
  %s4 = inlined_call_operand.vmem [shape: f32[2,9], index: 4, kind: input, shape index: {}]
  %s5 = inlined_call_operand.<no memory space> [shape: f32[], index: 5, kind: input, shape index: {}]
  %s6 = inlined_call_operand.vmem [shape: f32[6,9], index: 6, kind: input, shape index: {}]
  %s7 = inlined_call_operand.<no memory space> [shape: f32[], index: 7, kind: input, shape index: {}]
  %s8 = inlined_call_operand.<no memory space> [shape: s32[], index: 8, kind: input, shape index: {}]
  %s9 = inlined_call_operand.hbm [shape: f32[4,5], index: 9, kind: output, shape index: {}]
  %s10 = sld [smem:[#allocation0]]
  $region34: #{selfie_forward.2} parent=0
    _
  %s12 = ssub.s32 1, %s10
  %s13 = scalar_select 0, %s12, %s10
  %v14 = vstv %s5
  %v15 = vstv %s5
  %v16 = vstv %s7
  %v17 = vstv %s8
  $region1: #{selfie_forward.2} parent=0
    #allocation12 [shape = 'u8[2048]{0}', space=vmem, size = 0x800, scoped, tag = 'output window, operand 0, single buffered']
    #allocation13 [shape = 's32[1]{0}', space=sflag, size = 0x4, scoped, tag = 'scoped memory for selfie_forward.2']
    #allocation14 [shape = 'u8[8192]{0}', space=vmem, size = 0x2000, dematerialized = true, scoped, tag = 'FusionAdapter Buffer %select_maximum_fusion.1 = f32[16,9]{1,0:T(8,128)} fusion(%param_4.18, %param_5.14, %param_6.9, %param_7.7, %param_8.5), kind=kLoop, calls=%fused_computation.17.clone.clone, metadata={op_name="jit(selfie_forward)/concatenate" stack_frame_id=23}']
    %18 = vsyncpa [#allocation13], 0
    // Predicated region
    $region2: #{selfie_forward.2} parent=1 // pred_check
      _
    $region3: #{selfie_forward.2} parent=1 // pred_check_branch
      %20 = sbr.rel (0) target = $region5
    $region4: #{selfie_forward.2} parent=1 // pred_region
      _
    $region5: #{selfie_forward.2} parent=1 // pred_fallthru
      _
    // Predicated region
    $region6: #{selfie_forward.2} parent=1 // pred_check
      _
    $region7: #{selfie_forward.2} parent=1 // pred_check_branch
      %22 = sbr.rel (0) target = $region9
    $region8: #{selfie_forward.2} parent=1 // pred_region
      _
    $region9: #{selfie_forward.2} parent=1 // pred_fallthru
      _
    // Predicated region
    $region10: #{selfie_forward.2} parent=1 // pred_check
      _
    $region11: #{selfie_forward.2} parent=1 // pred_check_branch
      %24 = sbr.rel (0) target = $region13
    $region12: #{selfie_forward.2} parent=1 // pred_region
      _
    $region13: #{selfie_forward.2} parent=1 // pred_fallthru
      _
    // Predicated region
    $region14: #{selfie_forward.2} parent=1 // pred_check
      _
    $region15: #{selfie_forward.2} parent=1 // pred_check_branch
      %26 = sbr.rel (0) target = $region17
    $region16: #{selfie_forward.2} parent=1 // pred_region
      _
    $region17: #{selfie_forward.2} parent=1 // pred_fallthru
      _
    // Predicated region
    $region18: #{selfie_forward.2} parent=1 // pred_check
      _
    $region19: #{selfie_forward.2} parent=1 // pred_check_branch
      %28 = sbr.rel (0) target = $region21
    $region20: #{selfie_forward.2} parent=1 // pred_region
      %s30 = ssub.s32 1, 0
      %s31 = smul.u32 32, %s30
      %p32 = scmp.lt.s32.totalorder 0, 0
      %s33 = scalar_select %p32, 0, 0
      %s34 = smul.addr %s33, 2
      %s35 = scalar_lea.vmem %s4, %s34
      %s37 = ssub.s32 1, 0
      %s38 = smul.u32 32, %s37
    $region21: #{selfie_forward.2} parent=1 // pred_fallthru
      _
    // Predicated region
    $region22: #{selfie_forward.2} parent=1 // pred_check
      _
    $region23: #{selfie_forward.2} parent=1 // pred_check_branch
      %40 = sbr.rel (0) target = $region25
    $region24: #{selfie_forward.2} parent=1 // pred_region
      _
    $region25: #{selfie_forward.2} parent=1 // pred_fallthru
      _
    %s42 = ssub.s32 1, 0
    %s43 = smul.u32 32, %s42
    %p44 = scmp.lt.s32.totalorder 0, 0
    %s45 = scalar_select %p44, 0, 0
    %s46 = smul.addr %s45, 2
    %s47 = scalar_lea.vmem %s4, %s46
    %s49 = ssub.s32 1, 0
    %s50 = smul.u32 32, %s49
    %p51 = scmp.lt.s32.totalorder 0, 0
    %s52 = scalar_select %p51, 0, 0
    %s53 = smul.addr %s52, 2
    %s54 = scalar_lea.vmem %s4, %s53
    %s56 = ssub.s32 1, 0
    %s57 = smul.u32 32, %s56
    %s58 = ssub.s32 0, 0
    %p59 = scmp.lt.s32.totalorder %s58, 0
    %s60 = scalar_select %p59, 0, 255
    %s61 = sand.u32 3, %s60
    %s62 = sand.u32 3, %s61
    %v63 = vld [vmem:[%s54] sm:%s62]
    %v64 = vld [vmem:[%s6] sm:$0x3f]
    %v65 = vlaneseq
    %v66 = vshrl.u32 %v65, 7
    %vm68 = vcmp.lt.s32.totalorder %v66, 6
    %v69 = vsel %vm68, %v64, %v15
    %v70 = vlaneseq
    %v71 = vand.u32 %v70, 127
    %vm73 = vcmp.lt.s32.totalorder %v71, 9
    %v74 = vsel %vm73, %v69, %v15
    %v75 = vlaneseq
    %v76 = vshrl.u32 %v75, 7
    %79 = xla_tuple %v76, %v17
    %80 = xla_tuple %79
    %vm81 = vcmp.lt.s32.totalorder %v76, %v17
    %v82 = vsel %vm81, 1, 0
    %83 = xla_tuple %v82
    %84 = xla_tuple %v82, %v74, %v16
    %85 = xla_tuple %84
    %v86 = vsel %vm81, %v74, %v16
    %87 = xla_tuple %v86
    %v88 = vlaneseq
    %v89 = vshrl.u32 %v88, 7
    %92 = xla_tuple %v89, %v17
    %93 = xla_tuple %92
    %vm94 = vcmp.ge.s32.totalorder %v89, %v17
    %v95 = vsel %vm94, 1, 0
    %96 = xla_tuple %v95
    %97 = xla_tuple %v95, %v14, %v16
    %98 = xla_tuple %97
    %v99 = vsel %vm94, %v14, %v16
    %100 = xla_tuple %v99
    %101 = xla_tuple %v86, %v99
    %102 = xla_tuple %101
    %v103 = vmax.f32 %v86, %v99
    %104 = xla_tuple %v103
    %106 = vst [vmem:[#allocation14] sm:$0xff] %v103
    %v107 = vlaneseq
    %v108 = vshrl.u32 %v107, 7
    %v109 = vadd.s32 %v108, 8
    %vm110 = vcmp.lt.s32.totalorder %v109, 10
    %v111 = vsel %vm110, %v63, %v14
    %v112 = vlaneseq
    %v113 = vand.u32 %v112, 127
    %vm115 = vcmp.lt.s32.totalorder %v113, 9
    %v116 = vsel %vm115, %v111, %v14
    %v117 = vlaneseq
    %v118 = vshrl.u32 %v117, 7
    %v120 = vadd.s32 %v118, 8
    %121 = xla_tuple %v120, %v17
    %122 = xla_tuple %121
    %vm123 = vcmp.lt.s32.totalorder %v120, %v17
    %v124 = vsel %vm123, 1, 0
    %125 = xla_tuple %v124
    %126 = xla_tuple %v124, %v15, %v16
    %127 = xla_tuple %126
    %v128 = vsel %vm123, %v15, %v16
    %129 = xla_tuple %v128
    %v130 = vlaneseq
    %v131 = vshrl.u32 %v130, 7
    %v133 = vadd.s32 %v131, 8
    %134 = xla_tuple %v133, %v17
    %135 = xla_tuple %134
    %vm136 = vcmp.ge.s32.totalorder %v133, %v17
    %v137 = vsel %vm136, 1, 0
    %138 = xla_tuple %v137
    %139 = xla_tuple %v137, %v116, %v16
    %140 = xla_tuple %139
    %v141 = vsel %vm136, %v116, %v16
    %142 = xla_tuple %v141
    %143 = xla_tuple %v128, %v141
    %144 = xla_tuple %143
    %v145 = vmax.f32 %v128, %v141
    %146 = xla_tuple %v145
    %s147 = scalar_lea.vmem [#allocation14], 8
    %149 = vst [vmem:[%s147] sm:$0xff] %v145
    %v151 = vld [vmem:[%s0] sm:$0xff]
    %v152 = vld [vmem:[%s0 + $0x8] sm:$0xff]
    %v153 = vld [vmem:[%s0 + $0x10] sm:$0xff]
    %v154 = vld [vmem:[%s0 + $0x18] sm:$0xff]
    %v155 = vld [vmem:[%s0 + $0x20] sm:$0xff]
    %v156 = vld [vmem:[%s0 + $0x28] sm:$0xff]
    %v157 = vld [vmem:[%s0 + $0x30] sm:$0xff]
    %v158 = vld [vmem:[%s0 + $0x38] sm:$0xff]
    %v159 = vld [vmem:[%s0 + $0x40] sm:$0xff]
    %v160 = vld [vmem:[%s0 + $0x48] sm:$0xff]
    %v161 = vld [vmem:[%s0 + $0x50] sm:$0xff]
    %v162 = vld [vmem:[%s0 + $0x58] sm:$0xff]
    %v163 = vld [vmem:[%s0 + $0x60] sm:$0xff]
    %v164 = vld [vmem:[%s0 + $0x68] sm:$0xff]
    %v165 = vld [vmem:[%s0 + $0x70] sm:$0xff]
    %v166 = vld [vmem:[%s0 + $0x78] sm:$0xff]
    %v167 = vld [vmem:[%s0 + $0x80] sm:$0xff]
    %v168 = vld [vmem:[%s0 + $0x88] sm:$0xff]
    %v169 = vld [vmem:[%s0 + $0x90] sm:$0xff]
    %v170 = vld [vmem:[%s0 + $0x98] sm:$0xff]
    %v171 = vld [vmem:[%s0 + $0xa0] sm:$0xff]
    %v172 = vld [vmem:[%s0 + $0xa8] sm:$0xff]
    %v173 = vld [vmem:[%s0 + $0xb0] sm:$0xff]
    %v174 = vld [vmem:[%s0 + $0xb8] sm:$0xff]
    %v175 = vld [vmem:[%s0 + $0xc0] sm:$0xff]
    %v176 = vld [vmem:[%s0 + $0xc8] sm:$0xff]
    %v177 = vld [vmem:[%s0 + $0xd0] sm:$0xff]
    %v178 = vld [vmem:[%s0 + $0xd8] sm:$0xff]
    %v179 = vld [vmem:[%s0 + $0xe0] sm:$0xff]
    %v180 = vld [vmem:[%s0 + $0xe8] sm:$0xff]
    %v181 = vld [vmem:[%s0 + $0xf0] sm:$0xff]
    %v182 = vld [vmem:[%s0 + $0xf8] sm:$0xff]
    %v183 = vld [vmem:[%s0 + $0x100] sm:$0xff]
    %v184 = vld [vmem:[%s0 + $0x108] sm:$0xff]
    %v185 = vld [vmem:[%s0 + $0x110] sm:$0xff]
    %v186 = vld [vmem:[%s0 + $0x118] sm:$0xff]
    %v187 = vld [vmem:[%s0 + $0x120] sm:$0xff]
    %v188 = vld [vmem:[%s0 + $0x128] sm:$0xff]
    %v189 = vld [vmem:[%s0 + $0x130] sm:$0xff]
    %v190 = vld [vmem:[%s0 + $0x138] sm:$0xff]
    %v191 = vld [vmem:[%s0 + $0x140] sm:$0xff]
    %v192 = vld [vmem:[%s0 + $0x148] sm:$0xff]
    %v193 = vld [vmem:[%s0 + $0x150] sm:$0xff]
    %v194 = vld [vmem:[%s0 + $0x158] sm:$0xff]
    %v195 = vld [vmem:[%s0 + $0x160] sm:$0xff]
    %v196 = vld [vmem:[%s0 + $0x168] sm:$0xff]
    %v197 = vld [vmem:[%s0 + $0x170] sm:$0xff]
    %v198 = vld [vmem:[%s0 + $0x178] sm:$0xff]
    %v199 = vld [vmem:[%s0 + $0x180] sm:$0xff]
    %v200 = vld [vmem:[%s0 + $0x188] sm:$0xff]
    %v201 = vld [vmem:[%s0 + $0x190] sm:$0xff]
    %v202 = vld [vmem:[%s0 + $0x198] sm:$0xff]
    %v203 = vld [vmem:[%s0 + $0x1a0] sm:$0xff]
    %v204 = vld [vmem:[%s0 + $0x1a8] sm:$0xff]
    %v205 = vld [vmem:[%s0 + $0x1b0] sm:$0xff]
    %v206 = vld [vmem:[%s0 + $0x1b8] sm:$0xff]
    %v207 = vld [vmem:[%s0 + $0x1c0] sm:$0xff]
    %v208 = vld [vmem:[%s0 + $0x1c8] sm:$0xff]
    %v209 = vld [vmem:[%s0 + $0x1d0] sm:$0xff]
    %v210 = vld [vmem:[%s0 + $0x1d8] sm:$0xff]
    %v211 = vld [vmem:[%s0 + $0x1e0] sm:$0xff]
    %v212 = vld [vmem:[%s0 + $0x1e8] sm:$0xff]
    %v213 = vld [vmem:[%s0 + $0x1f0] sm:$0xff]
    %v214 = vld [vmem:[%s0 + $0x1f8] sm:$0xff]
    %v215 = vld [vmem:[%s0 + $0x200] sm:$0xff]
    %v216 = vld [vmem:[%s0 + $0x208] sm:$0xff]
    %v217 = vld [vmem:[%s0 + $0x210] sm:$0xff]
    %v218 = vld [vmem:[%s0 + $0x218] sm:$0xff]
    %v219 = vld [vmem:[%s0 + $0x220] sm:$0xff]
    %v220 = vld [vmem:[%s0 + $0x228] sm:$0xff]
    %v221 = vld [vmem:[%s0 + $0x230] sm:$0xff]
    %v222 = vld [vmem:[%s0 + $0x238] sm:$0xff]
    %v223 = vld [vmem:[%s0 + $0x240] sm:$0xff]
    %v224 = vld [vmem:[%s0 + $0x248] sm:$0xff]
    %v225 = vld [vmem:[%s0 + $0x250] sm:$0xff]
    %v226 = vld [vmem:[%s0 + $0x258] sm:$0xff]
    %v227 = vld [vmem:[%s0 + $0x260] sm:$0xff]
    %v228 = vld [vmem:[%s0 + $0x268] sm:$0xff]
    %v229 = vld [vmem:[%s0 + $0x270] sm:$0xff]
    %v230 = vld [vmem:[%s0 + $0x278] sm:$0xff]
    %v231 = vld [vmem:[%s0 + $0x280] sm:$0xff]
    %v232 = vld [vmem:[%s0 + $0x288] sm:$0xff]
    %v233 = vld [vmem:[%s0 + $0x290] sm:$0xff]
    %v234 = vld [vmem:[%s0 + $0x298] sm:$0xff]
    %v235 = vld [vmem:[%s0 + $0x2a0] sm:$0xff]
    %v236 = vld [vmem:[%s0 + $0x2a8] sm:$0xff]
    %v237 = vld [vmem:[%s0 + $0x2b0] sm:$0xff]
    %v238 = vld [vmem:[%s0 + $0x2b8] sm:$0xff]
    %v239 = vld [vmem:[%s0 + $0x2c0] sm:$0xff]
    %v240 = vld [vmem:[%s0 + $0x2c8] sm:$0xff]
    %v241 = vld [vmem:[%s0 + $0x2d0] sm:$0xff]
    %v242 = vld [vmem:[%s0 + $0x2d8] sm:$0xff]
    %v243 = vld [vmem:[%s0 + $0x2e0] sm:$0xff]
    %v244 = vld [vmem:[%s0 + $0x2e8] sm:$0xff]
    %v245 = vld [vmem:[%s0 + $0x2f0] sm:$0xff]
    %v246 = vld [vmem:[%s0 + $0x2f8] sm:$0xff]
    %v247 = vld [vmem:[%s0 + $0x300] sm:$0xff]
    %v248 = vld [vmem:[%s0 + $0x308] sm:$0xff]
    %v249 = vld [vmem:[%s0 + $0x310] sm:$0xff]
    %v250 = vld [vmem:[%s0 + $0x318] sm:$0xff]
    %v251 = vld [vmem:[%s0 + $0x320] sm:$0xff]
    %v252 = vld [vmem:[%s0 + $0x328] sm:$0xff]
    %v253 = vld [vmem:[%s0 + $0x330] sm:$0xff]
    %v254 = vld [vmem:[%s0 + $0x338] sm:$0xff]
    %v255 = vld [vmem:[%s0 + $0x340] sm:$0xff]
    %v256 = vld [vmem:[%s0 + $0x348] sm:$0xff]
    %v257 = vld [vmem:[%s0 + $0x350] sm:$0xff]
    %v258 = vld [vmem:[%s0 + $0x358] sm:$0xff]
    %v259 = vld [vmem:[%s0 + $0x360] sm:$0xff]
    %v260 = vld [vmem:[%s0 + $0x368] sm:$0xff]
    %v261 = vld [vmem:[%s0 + $0x370] sm:$0xff]
    %v262 = vld [vmem:[%s0 + $0x378] sm:$0xff]
    %v263 = vld [vmem:[%s0 + $0x380] sm:$0xff]
    %v264 = vld [vmem:[%s0 + $0x388] sm:$0xff]
    %v265 = vld [vmem:[%s0 + $0x390] sm:$0xff]
    %v266 = vld [vmem:[%s0 + $0x398] sm:$0xff]
    %v267 = vld [vmem:[%s0 + $0x3a0] sm:$0xff]
    %v268 = vld [vmem:[%s0 + $0x3a8] sm:$0xff]
    %v269 = vld [vmem:[%s0 + $0x3b0] sm:$0xff]
    %v270 = vld [vmem:[%s0 + $0x3b8] sm:$0xff]
    %v271 = vld [vmem:[%s1] sm:$0xf]
    %v272 = vld [vmem:[%s1 + $0x4] sm:$0xf]
    %v273 = vld [vmem:[%s1 + $0x8] sm:$0xf]
    %v274 = vld [vmem:[%s1 + $0xc] sm:$0xf]
    %v275 = vld [vmem:[%s1 + $0x10] sm:$0xf]
    %v276 = vld [vmem:[%s1 + $0x14] sm:$0xf]
    %v277 = vld [vmem:[%s1 + $0x18] sm:$0xf]
    %v278 = vld [vmem:[%s1 + $0x1c] sm:$0xf]
    %v279 = vld [vmem:[%s1 + $0x20] sm:$0xf]
    %v280 = vld [vmem:[%s1 + $0x24] sm:$0xf]
    %v281 = vld [vmem:[%s1 + $0x28] sm:$0xf]
    %v282 = vld [vmem:[%s1 + $0x2c] sm:$0xf]
    %v283 = vld [vmem:[%s1 + $0x30] sm:$0xf]
    %v284 = vld [vmem:[%s1 + $0x34] sm:$0xf]
    %v285 = vld [vmem:[%s1 + $0x38] sm:$0xf]
    %v286 = vld [vmem:[%s1 + $0x3c] sm:$0xf]
    %v287 = vld [vmem:[%s1 + $0x40] sm:$0xf]
    %v288 = vld [vmem:[%s1 + $0x44] sm:$0xf]
    %v289 = vld [vmem:[%s1 + $0x48] sm:$0xf]
    %v290 = vld [vmem:[%s1 + $0x4c] sm:$0xf]
    %v291 = vld [vmem:[%s1 + $0x50] sm:$0xf]
    %v292 = vld [vmem:[%s1 + $0x54] sm:$0xf]
    %v293 = vld [vmem:[%s1 + $0x58] sm:$0xf]
    %v294 = vld [vmem:[%s1 + $0x5c] sm:$0xf]
    %v295 = vld [vmem:[%s1 + $0x60] sm:$0xf]
    %v296 = vld [vmem:[%s1 + $0x64] sm:$0xf]
    %v297 = vld [vmem:[%s1 + $0x68] sm:$0xf]
    %v298 = vld [vmem:[%s1 + $0x6c] sm:$0xf]
    %v299 = vld [vmem:[%s1 + $0x70] sm:$0xf]
    %v300 = vld [vmem:[%s1 + $0x74] sm:$0xf]
    %v301 = vld [vmem:[%s1 + $0x78] sm:$0xf]
    %v302 = vld [vmem:[%s1 + $0x7c] sm:$0xf]
    %v303 = vld [vmem:[%s1 + $0x80] sm:$0xf]
    %v304 = vld [vmem:[%s1 + $0x84] sm:$0xf]
    %v305 = vld [vmem:[%s1 + $0x88] sm:$0xf]
    %v306 = vld [vmem:[%s1 + $0x8c] sm:$0xf]
    %v307 = vld [vmem:[%s1 + $0x90] sm:$0xf]
    %v308 = vld [vmem:[%s1 + $0x94] sm:$0xf]
    %v309 = vld [vmem:[%s1 + $0x98] sm:$0xf]
    %v310 = vld [vmem:[%s1 + $0x9c] sm:$0xf]
    %v311 = vld [vmem:[%s1 + $0xa0] sm:$0xf]
    %v312 = vld [vmem:[%s1 + $0xa4] sm:$0xf]
    %v313 = vld [vmem:[%s1 + $0xa8] sm:$0xf]
    %v314 = vld [vmem:[%s1 + $0xac] sm:$0xf]
    %v315 = vld [vmem:[%s1 + $0xb0] sm:$0xf]
    %v316 = vld [vmem:[%s1 + $0xb4] sm:$0xf]
    %v317 = vld [vmem:[%s1 + $0xb8] sm:$0xf]
    %v318 = vld [vmem:[%s1 + $0xbc] sm:$0xf]
    %v319 = vld [vmem:[%s1 + $0xc0] sm:$0xf]
    %v320 = vld [vmem:[%s1 + $0xc4] sm:$0xf]
    %v321 = vld [vmem:[%s1 + $0xc8] sm:$0xf]
    %v322 = vld [vmem:[%s1 + $0xcc] sm:$0xf]
    %v323 = vld [vmem:[%s1 + $0xd0] sm:$0xf]
    %v324 = vld [vmem:[%s1 + $0xd4] sm:$0xf]
    %v325 = vld [vmem:[%s1 + $0xd8] sm:$0xf]
    %v326 = vld [vmem:[%s1 + $0xdc] sm:$0xf]
    %v327 = vld [vmem:[%s1 + $0xe0] sm:$0xf]
    %v328 = vld [vmem:[%s1 + $0xe4] sm:$0xf]
    %v329 = vld [vmem:[%s1 + $0xe8] sm:$0xf]
    %v330 = vld [vmem:[%s1 + $0xec] sm:$0xf]
    %v331 = vld [vmem:[%s1 + $0xf0] sm:$0xf]
    %v332 = vld [vmem:[%s1 + $0xf4] sm:$0xf]
    %v333 = vld [vmem:[%s1 + $0xf8] sm:$0xf]
    %v334 = vld [vmem:[%s1 + $0xfc] sm:$0xf]
    %v335 = vld [vmem:[%s1 + $0x100] sm:$0xf]
    %v336 = vld [vmem:[%s1 + $0x104] sm:$0xf]
    %v337 = vld [vmem:[%s1 + $0x108] sm:$0xf]
    %v338 = vld [vmem:[%s1 + $0x10c] sm:$0xf]
    %v339 = vld [vmem:[%s1 + $0x110] sm:$0xf]
    %v340 = vld [vmem:[%s1 + $0x114] sm:$0xf]
    %v341 = vld [vmem:[%s1 + $0x118] sm:$0xf]
    %v342 = vld [vmem:[%s1 + $0x11c] sm:$0xf]
    %v343 = vld [vmem:[%s1 + $0x120] sm:$0xf]
    %v344 = vld [vmem:[%s1 + $0x124] sm:$0xf]
    %v345 = vld [vmem:[%s1 + $0x128] sm:$0xf]
    %v346 = vld [vmem:[%s1 + $0x12c] sm:$0xf]
    %v347 = vld [vmem:[%s1 + $0x130] sm:$0xf]
    %v348 = vld [vmem:[%s1 + $0x134] sm:$0xf]
    %v349 = vld [vmem:[%s1 + $0x138] sm:$0xf]
    %v350 = vld [vmem:[%s1 + $0x13c] sm:$0xf]
    %v351 = vld [vmem:[%s1 + $0x140] sm:$0xf]
    %v352 = vld [vmem:[%s1 + $0x144] sm:$0xf]
    %v353 = vld [vmem:[%s1 + $0x148] sm:$0xf]
    %v354 = vld [vmem:[%s1 + $0x14c] sm:$0xf]
    %v355 = vld [vmem:[%s1 + $0x150] sm:$0xf]
    %v356 = vld [vmem:[%s1 + $0x154] sm:$0xf]
    %v357 = vld [vmem:[%s1 + $0x158] sm:$0xf]
    %v358 = vld [vmem:[%s1 + $0x15c] sm:$0xf]
    %v359 = vld [vmem:[%s1 + $0x160] sm:$0xf]
    %v360 = vld [vmem:[%s1 + $0x164] sm:$0xf]
    %v361 = vld [vmem:[%s1 + $0x168] sm:$0xf]
    %v362 = vld [vmem:[%s1 + $0x16c] sm:$0xf]
    %v363 = vld [vmem:[%s1 + $0x170] sm:$0xf]
    %v364 = vld [vmem:[%s1 + $0x174] sm:$0xf]
    %v365 = vld [vmem:[%s1 + $0x178] sm:$0xf]
    %v366 = vld [vmem:[%s1 + $0x17c] sm:$0xf]
    %v367 = vld [vmem:[%s1 + $0x180] sm:$0xf]
    %v368 = vld [vmem:[%s1 + $0x184] sm:$0xf]
    %v369 = vld [vmem:[%s1 + $0x188] sm:$0xf]
    %v370 = vld [vmem:[%s1 + $0x18c] sm:$0xf]
    %v371 = vld [vmem:[%s1 + $0x190] sm:$0xf]
    %v372 = vld [vmem:[%s1 + $0x194] sm:$0xf]
    %v373 = vld [vmem:[%s1 + $0x198] sm:$0xf]
    %v374 = vld [vmem:[%s1 + $0x19c] sm:$0xf]
    %v375 = vld [vmem:[%s1 + $0x1a0] sm:$0xf]
    %v376 = vld [vmem:[%s1 + $0x1a4] sm:$0xf]
    %v377 = vld [vmem:[%s1 + $0x1a8] sm:$0xf]
    %v378 = vld [vmem:[%s1 + $0x1ac] sm:$0xf]
    %v379 = vld [vmem:[%s1 + $0x1b0] sm:$0xf]
    %v380 = vld [vmem:[%s1 + $0x1b4] sm:$0xf]
    %v381 = vld [vmem:[%s1 + $0x1b8] sm:$0xf]
    %v382 = vld [vmem:[%s1 + $0x1bc] sm:$0xf]
    %v383 = vld [vmem:[%s1 + $0x1c0] sm:$0xf]
    %v384 = vld [vmem:[%s1 + $0x1c4] sm:$0xf]
    %v385 = vld [vmem:[%s1 + $0x1c8] sm:$0xf]
    %v386 = vld [vmem:[%s1 + $0x1cc] sm:$0xf]
    %v387 = vld [vmem:[%s1 + $0x1d0] sm:$0xf]
    %v388 = vld [vmem:[%s1 + $0x1d4] sm:$0xf]
    %v389 = vld [vmem:[%s1 + $0x1d8] sm:$0xf]
    %v390 = vld [vmem:[%s1 + $0x1dc] sm:$0xf]
    %v391 = vld [vmem:[%s1 + $0x1e0] sm:$0xf]
    %v392 = vld [vmem:[%s1 + $0x1e4] sm:$0xf]
    %v393 = vld [vmem:[%s1 + $0x1e8] sm:$0xf]
    %v394 = vld [vmem:[%s1 + $0x1ec] sm:$0xf]
    %v395 = vld [vmem:[%s1 + $0x1f0] sm:$0xf]
    %v396 = vld [vmem:[%s1 + $0x1f4] sm:$0xf]
    %v397 = vld [vmem:[%s1 + $0x1f8] sm:$0xf]
    %v398 = vld [vmem:[%s1 + $0x1fc] sm:$0xf]
    %v399 = vld [vmem:[%s1 + $0x200] sm:$0xf]
    %v400 = vld [vmem:[%s1 + $0x204] sm:$0xf]
    %v401 = vld [vmem:[%s1 + $0x208] sm:$0xf]
    %v402 = vld [vmem:[%s1 + $0x20c] sm:$0xf]
    %v403 = vld [vmem:[%s1 + $0x210] sm:$0xf]
    %v404 = vld [vmem:[%s1 + $0x214] sm:$0xf]
    %v405 = vld [vmem:[%s1 + $0x218] sm:$0xf]
    %v406 = vld [vmem:[%s1 + $0x21c] sm:$0xf]
    %v407 = vld [vmem:[%s1 + $0x220] sm:$0xf]
    %v408 = vld [vmem:[%s1 + $0x224] sm:$0xf]
    %v409 = vld [vmem:[%s1 + $0x228] sm:$0xf]
    %v410 = vld [vmem:[%s1 + $0x22c] sm:$0xf]
    %v411 = vld [vmem:[%s1 + $0x230] sm:$0xf]
    %v412 = vld [vmem:[%s1 + $0x234] sm:$0xf]
    %v413 = vld [vmem:[%s1 + $0x238] sm:$0xf]
    %v414 = vld [vmem:[%s1 + $0x23c] sm:$0xf]
    %v415 = vld [vmem:[%s1 + $0x240] sm:$0xf]
    %v416 = vld [vmem:[%s1 + $0x244] sm:$0xf]
    %v417 = vld [vmem:[%s1 + $0x248] sm:$0xf]
    %v418 = vld [vmem:[%s1 + $0x24c] sm:$0xf]
    %v419 = vld [vmem:[%s1 + $0x250] sm:$0xf]
    %v420 = vld [vmem:[%s1 + $0x254] sm:$0xf]
    %v541 = vunpack.c.l.b16 %v151
    %v542 = vunpack.c.h.b16 %v151
    %v543 = vunpack.c.l.b16 %v152
    %v544 = vunpack.c.h.b16 %v152
    %v545 = vunpack.c.l.b16 %v153
    %v546 = vunpack.c.h.b16 %v153
    %v547 = vunpack.c.l.b16 %v154
    %v548 = vunpack.c.h.b16 %v154
    %v549 = vunpack.c.l.b16 %v155
    %v550 = vunpack.c.h.b16 %v155
    %v551 = vunpack.c.l.b16 %v156
    %v552 = vunpack.c.h.b16 %v156
    %v553 = vunpack.c.l.b16 %v157
    %v554 = vunpack.c.h.b16 %v157
    %v555 = vunpack.c.l.b16 %v158
    %v556 = vunpack.c.h.b16 %v158
    %v557 = vunpack.c.l.b16 %v159
    %v558 = vunpack.c.h.b16 %v159
    %v559 = vunpack.c.l.b16 %v160
    %v560 = vunpack.c.h.b16 %v160
    %v561 = vunpack.c.l.b16 %v161
    %v562 = vunpack.c.h.b16 %v161
    %v563 = vunpack.c.l.b16 %v162
    %v564 = vunpack.c.h.b16 %v162
    %v565 = vunpack.c.l.b16 %v163
    %v566 = vunpack.c.h.b16 %v163
    %v567 = vunpack.c.l.b16 %v164
    %v568 = vunpack.c.h.b16 %v164
    %v569 = vunpack.c.l.b16 %v165
    %v570 = vunpack.c.h.b16 %v165
    %v571 = vunpack.c.l.b16 %v166
    %v572 = vunpack.c.h.b16 %v166
    %v573 = vunpack.c.l.b16 %v167
    %v574 = vunpack.c.h.b16 %v167
    %v575 = vunpack.c.l.b16 %v168
    %v576 = vunpack.c.h.b16 %v168
    %v577 = vunpack.c.l.b16 %v169
    %v578 = vunpack.c.h.b16 %v169
    %v579 = vunpack.c.l.b16 %v170
    %v580 = vunpack.c.h.b16 %v170
    %v581 = vunpack.c.l.b16 %v171
    %v582 = vunpack.c.h.b16 %v171
    %v583 = vunpack.c.l.b16 %v172
    %v584 = vunpack.c.h.b16 %v172
    %v585 = vunpack.c.l.b16 %v173
    %v586 = vunpack.c.h.b16 %v173
    %v587 = vunpack.c.l.b16 %v174
    %v588 = vunpack.c.h.b16 %v174
    %v589 = vunpack.c.l.b16 %v175
    %v590 = vunpack.c.h.b16 %v175
    %v591 = vunpack.c.l.b16 %v176
    %v592 = vunpack.c.h.b16 %v176
    %v593 = vunpack.c.l.b16 %v177
    %v594 = vunpack.c.h.b16 %v177
    %v595 = vunpack.c.l.b16 %v178
    %v596 = vunpack.c.h.b16 %v178
    %v597 = vunpack.c.l.b16 %v179
    %v598 = vunpack.c.h.b16 %v179
    %v599 = vunpack.c.l.b16 %v180
    %v600 = vunpack.c.h.b16 %v180
    %v601 = vunpack.c.l.b16 %v181
    %v602 = vunpack.c.h.b16 %v181
    %v603 = vunpack.c.l.b16 %v182
    %v604 = vunpack.c.h.b16 %v182
    %v605 = vunpack.c.l.b16 %v183
    %v606 = vunpack.c.h.b16 %v183
    %v607 = vunpack.c.l.b16 %v184
    %v608 = vunpack.c.h.b16 %v184
    %v609 = vunpack.c.l.b16 %v185
    %v610 = vunpack.c.h.b16 %v185
    %v611 = vunpack.c.l.b16 %v186
    %v612 = vunpack.c.h.b16 %v186
    %v613 = vunpack.c.l.b16 %v187
    %v614 = vunpack.c.h.b16 %v187
    %v615 = vunpack.c.l.b16 %v188
    %v616 = vunpack.c.h.b16 %v188
    %v617 = vunpack.c.l.b16 %v189
    %v618 = vunpack.c.h.b16 %v189
    %v619 = vunpack.c.l.b16 %v190
    %v620 = vunpack.c.h.b16 %v190
    %v621 = vunpack.c.l.b16 %v191
    %v622 = vunpack.c.h.b16 %v191
    %v623 = vunpack.c.l.b16 %v192
    %v624 = vunpack.c.h.b16 %v192
    %v625 = vunpack.c.l.b16 %v193
    %v626 = vunpack.c.h.b16 %v193
    %v627 = vunpack.c.l.b16 %v194
    %v628 = vunpack.c.h.b16 %v194
    %v629 = vunpack.c.l.b16 %v195
    %v630 = vunpack.c.h.b16 %v195
    %v631 = vunpack.c.l.b16 %v196
    %v632 = vunpack.c.h.b16 %v196
    %v633 = vunpack.c.l.b16 %v197
    %v634 = vunpack.c.h.b16 %v197
    %v635 = vunpack.c.l.b16 %v198
    %v636 = vunpack.c.h.b16 %v198
    %v637 = vunpack.c.l.b16 %v199
    %v638 = vunpack.c.h.b16 %v199
    %v639 = vunpack.c.l.b16 %v200
    %v640 = vunpack.c.h.b16 %v200
    %v641 = vunpack.c.l.b16 %v201
    %v642 = vunpack.c.h.b16 %v201
    %v643 = vunpack.c.l.b16 %v202
    %v644 = vunpack.c.h.b16 %v202
    %v645 = vunpack.c.l.b16 %v203
    %v646 = vunpack.c.h.b16 %v203
    %v647 = vunpack.c.l.b16 %v204
    %v648 = vunpack.c.h.b16 %v204
    %v649 = vunpack.c.l.b16 %v205
    %v650 = vunpack.c.h.b16 %v205
    %v651 = vunpack.c.l.b16 %v206
    %v652 = vunpack.c.h.b16 %v206
    %v653 = vunpack.c.l.b16 %v207
    %v654 = vunpack.c.h.b16 %v207
    %v655 = vunpack.c.l.b16 %v208
    %v656 = vunpack.c.h.b16 %v208
    %v657 = vunpack.c.l.b16 %v209
    %v658 = vunpack.c.h.b16 %v209
    %v659 = vunpack.c.l.b16 %v210
    %v660 = vunpack.c.h.b16 %v210
    %v661 = vunpack.c.l.b16 %v211
    %v662 = vunpack.c.h.b16 %v211
    %v663 = vunpack.c.l.b16 %v212
    %v664 = vunpack.c.h.b16 %v212
    %v665 = vunpack.c.l.b16 %v213
    %v666 = vunpack.c.h.b16 %v213
    %v667 = vunpack.c.l.b16 %v214
    %v668 = vunpack.c.h.b16 %v214
    %v669 = vunpack.c.l.b16 %v215
    %v670 = vunpack.c.h.b16 %v215
    %v671 = vunpack.c.l.b16 %v216
    %v672 = vunpack.c.h.b16 %v216
    %v673 = vunpack.c.l.b16 %v217
    %v674 = vunpack.c.h.b16 %v217
    %v675 = vunpack.c.l.b16 %v218
    %v676 = vunpack.c.h.b16 %v218
    %v677 = vunpack.c.l.b16 %v219
    %v678 = vunpack.c.h.b16 %v219
    %v679 = vunpack.c.l.b16 %v220
    %v680 = vunpack.c.h.b16 %v220
    %v681 = vunpack.c.l.b16 %v221
    %v682 = vunpack.c.h.b16 %v221
    %v683 = vunpack.c.l.b16 %v222
    %v684 = vunpack.c.h.b16 %v222
    %v685 = vunpack.c.l.b16 %v223
    %v686 = vunpack.c.h.b16 %v223
    %v687 = vunpack.c.l.b16 %v224
    %v688 = vunpack.c.h.b16 %v224
    %v689 = vunpack.c.l.b16 %v225
    %v690 = vunpack.c.h.b16 %v225
    %v691 = vunpack.c.l.b16 %v226
    %v692 = vunpack.c.h.b16 %v226
    %v693 = vunpack.c.l.b16 %v227
    %v694 = vunpack.c.h.b16 %v227
    %v695 = vunpack.c.l.b16 %v228
    %v696 = vunpack.c.h.b16 %v228
    %v697 = vunpack.c.l.b16 %v229
    %v698 = vunpack.c.h.b16 %v229
    %v699 = vunpack.c.l.b16 %v230
    %v700 = vunpack.c.h.b16 %v230
    %v701 = vunpack.c.l.b16 %v231
    %v702 = vunpack.c.h.b16 %v231
    %v703 = vunpack.c.l.b16 %v232
    %v704 = vunpack.c.h.b16 %v232
    %v705 = vunpack.c.l.b16 %v233
    %v706 = vunpack.c.h.b16 %v233
    %v707 = vunpack.c.l.b16 %v234
    %v708 = vunpack.c.h.b16 %v234
    %v709 = vunpack.c.l.b16 %v235
    %v710 = vunpack.c.h.b16 %v235
    %v711 = vunpack.c.l.b16 %v236
    %v712 = vunpack.c.h.b16 %v236
    %v713 = vunpack.c.l.b16 %v237
    %v714 = vunpack.c.h.b16 %v237
    %v715 = vunpack.c.l.b16 %v238
    %v716 = vunpack.c.h.b16 %v238
    %v717 = vunpack.c.l.b16 %v239
    %v718 = vunpack.c.h.b16 %v239
    %v719 = vunpack.c.l.b16 %v240
    %v720 = vunpack.c.h.b16 %v240
    %v721 = vunpack.c.l.b16 %v241
    %v722 = vunpack.c.h.b16 %v241
    %v723 = vunpack.c.l.b16 %v242
    %v724 = vunpack.c.h.b16 %v242
    %v725 = vunpack.c.l.b16 %v243
    %v726 = vunpack.c.h.b16 %v243
    %v727 = vunpack.c.l.b16 %v244
    %v728 = vunpack.c.h.b16 %v244
    %v729 = vunpack.c.l.b16 %v245
    %v730 = vunpack.c.h.b16 %v245
    %v731 = vunpack.c.l.b16 %v246
    %v732 = vunpack.c.h.b16 %v246
    %v733 = vunpack.c.l.b16 %v247
    %v734 = vunpack.c.h.b16 %v247
    %v735 = vunpack.c.l.b16 %v248
    %v736 = vunpack.c.h.b16 %v248
    %v737 = vunpack.c.l.b16 %v249
    %v738 = vunpack.c.h.b16 %v249
    %v739 = vunpack.c.l.b16 %v250
    %v740 = vunpack.c.h.b16 %v250
    %v741 = vunpack.c.l.b16 %v251
    %v742 = vunpack.c.h.b16 %v251
    %v743 = vunpack.c.l.b16 %v252
    %v744 = vunpack.c.h.b16 %v252
    %v745 = vunpack.c.l.b16 %v253
    %v746 = vunpack.c.h.b16 %v253
    %v747 = vunpack.c.l.b16 %v254
    %v748 = vunpack.c.h.b16 %v254
    %v749 = vunpack.c.l.b16 %v255
    %v750 = vunpack.c.h.b16 %v255
    %v751 = vunpack.c.l.b16 %v256
    %v752 = vunpack.c.h.b16 %v256
    %v753 = vunpack.c.l.b16 %v257
    %v754 = vunpack.c.h.b16 %v257
    %v755 = vunpack.c.l.b16 %v258
    %v756 = vunpack.c.h.b16 %v258
    %v757 = vunpack.c.l.b16 %v259
    %v758 = vunpack.c.h.b16 %v259
    %v759 = vunpack.c.l.b16 %v260
    %v760 = vunpack.c.h.b16 %v260
    %v761 = vunpack.c.l.b16 %v261
    %v762 = vunpack.c.h.b16 %v261
    %v763 = vunpack.c.l.b16 %v262
    %v764 = vunpack.c.h.b16 %v262
    %v765 = vunpack.c.l.b16 %v263
    %v766 = vunpack.c.h.b16 %v263
    %v767 = vunpack.c.l.b16 %v264
    %v768 = vunpack.c.h.b16 %v264
    %v769 = vunpack.c.l.b16 %v265
    %v770 = vunpack.c.h.b16 %v265
    %v771 = vunpack.c.l.b16 %v266
    %v772 = vunpack.c.h.b16 %v266
    %v773 = vunpack.c.l.b16 %v267
    %v774 = vunpack.c.h.b16 %v267
    %v775 = vunpack.c.l.b16 %v268
    %v776 = vunpack.c.h.b16 %v268
    %v777 = vunpack.c.l.b16 %v269
    %v778 = vunpack.c.h.b16 %v269
    %v779 = vunpack.c.l.b16 %v270
    %v780 = vunpack.c.h.b16 %v270
    %v781 = vpack.c.b16 %v551, %v541
    %v782 = vpack.c.b16 %v552, %v542
    %v783 = vpack.c.b16 %v553, %v543
    %v784 = vpack.c.b16 %v554, %v544
    %v785 = vpack.c.b16 %v555, %v545
    %v786 = vpack.c.b16 %v556, %v546
    %v787 = vpack.c.b16 %v557, %v547
    %v788 = vpack.c.b16 %v558, %v548
    %v789 = vpack.c.b16 %v559, %v549
    %v790 = vpack.c.b16 %v560, %v550
    %v791 = vpack.c.b16 %v571, %v561
    %v792 = vpack.c.b16 %v572, %v562
    %v793 = vpack.c.b16 %v573, %v563
    %v794 = vpack.c.b16 %v574, %v564
    %v795 = vpack.c.b16 %v575, %v565
    %v796 = vpack.c.b16 %v576, %v566
    %v797 = vpack.c.b16 %v577, %v567
    %v798 = vpack.c.b16 %v578, %v568
    %v799 = vpack.c.b16 %v579, %v569
    %v800 = vpack.c.b16 %v580, %v570
    %v801 = vpack.c.b16 %v591, %v581
    %v802 = vpack.c.b16 %v592, %v582
    %v803 = vpack.c.b16 %v593, %v583
    %v804 = vpack.c.b16 %v594, %v584
    %v805 = vpack.c.b16 %v595, %v585
    %v806 = vpack.c.b16 %v596, %v586
    %v807 = vpack.c.b16 %v597, %v587
    %v808 = vpack.c.b16 %v598, %v588
    %v809 = vpack.c.b16 %v599, %v589
    %v810 = vpack.c.b16 %v600, %v590
    %v811 = vpack.c.b16 %v611, %v601
    %v812 = vpack.c.b16 %v612, %v602
    %v813 = vpack.c.b16 %v613, %v603
    %v814 = vpack.c.b16 %v614, %v604
    %v815 = vpack.c.b16 %v615, %v605
    %v816 = vpack.c.b16 %v616, %v606
    %v817 = vpack.c.b16 %v617, %v607
    %v818 = vpack.c.b16 %v618, %v608
    %v819 = vpack.c.b16 %v619, %v609
    %v820 = vpack.c.b16 %v620, %v610
    %v821 = vpack.c.b16 %v631, %v621
    %v822 = vpack.c.b16 %v632, %v622
    %v823 = vpack.c.b16 %v633, %v623
    %v824 = vpack.c.b16 %v634, %v624
    %v825 = vpack.c.b16 %v635, %v625
    %v826 = vpack.c.b16 %v636, %v626
    %v827 = vpack.c.b16 %v637, %v627
    %v828 = vpack.c.b16 %v638, %v628
    %v829 = vpack.c.b16 %v639, %v629
    %v830 = vpack.c.b16 %v640, %v630
    %v831 = vpack.c.b16 %v651, %v641
    %v832 = vpack.c.b16 %v652, %v642
    %v833 = vpack.c.b16 %v653, %v643
    %v834 = vpack.c.b16 %v654, %v644
    %v835 = vpack.c.b16 %v655, %v645
    %v836 = vpack.c.b16 %v656, %v646
    %v837 = vpack.c.b16 %v657, %v647
    %v838 = vpack.c.b16 %v658, %v648
    %v839 = vpack.c.b16 %v659, %v649
    %v840 = vpack.c.b16 %v660, %v650
    %v841 = vpack.c.b16 %v671, %v661
    %v842 = vpack.c.b16 %v672, %v662
    %v843 = vpack.c.b16 %v673, %v663
    %v844 = vpack.c.b16 %v674, %v664
    %v845 = vpack.c.b16 %v675, %v665
    %v846 = vpack.c.b16 %v676, %v666
    %v847 = vpack.c.b16 %v677, %v667
    %v848 = vpack.c.b16 %v678, %v668
    %v849 = vpack.c.b16 %v679, %v669
    %v850 = vpack.c.b16 %v680, %v670
    %v851 = vpack.c.b16 %v691, %v681
    %v852 = vpack.c.b16 %v692, %v682
    %v853 = vpack.c.b16 %v693, %v683
    %v854 = vpack.c.b16 %v694, %v684
    %v855 = vpack.c.b16 %v695, %v685
    %v856 = vpack.c.b16 %v696, %v686
    %v857 = vpack.c.b16 %v697, %v687
    %v858 = vpack.c.b16 %v698, %v688
    %v859 = vpack.c.b16 %v699, %v689
    %v860 = vpack.c.b16 %v700, %v690
    %v861 = vpack.c.b16 %v711, %v701
    %v862 = vpack.c.b16 %v712, %v702
    %v863 = vpack.c.b16 %v713, %v703
    %v864 = vpack.c.b16 %v714, %v704
    %v865 = vpack.c.b16 %v715, %v705
    %v866 = vpack.c.b16 %v716, %v706
    %v867 = vpack.c.b16 %v717, %v707
    %v868 = vpack.c.b16 %v718, %v708
    %v869 = vpack.c.b16 %v719, %v709
    %v870 = vpack.c.b16 %v720, %v710
    %v871 = vpack.c.b16 %v731, %v721
    %v872 = vpack.c.b16 %v732, %v722
    %v873 = vpack.c.b16 %v733, %v723
    %v874 = vpack.c.b16 %v734, %v724
    %v875 = vpack.c.b16 %v735, %v725
    %v876 = vpack.c.b16 %v736, %v726
    %v877 = vpack.c.b16 %v737, %v727
    %v878 = vpack.c.b16 %v738, %v728
    %v879 = vpack.c.b16 %v739, %v729
    %v880 = vpack.c.b16 %v740, %v730
    %v881 = vpack.c.b16 %v751, %v741
    %v882 = vpack.c.b16 %v752, %v742
    %v883 = vpack.c.b16 %v753, %v743
    %v884 = vpack.c.b16 %v754, %v744
    %v885 = vpack.c.b16 %v755, %v745
    %v886 = vpack.c.b16 %v756, %v746
    %v887 = vpack.c.b16 %v757, %v747
    %v888 = vpack.c.b16 %v758, %v748
    %v889 = vpack.c.b16 %v759, %v749
    %v890 = vpack.c.b16 %v760, %v750
    %v891 = vpack.c.b16 %v771, %v761
    %v892 = vpack.c.b16 %v772, %v762
    %v893 = vpack.c.b16 %v773, %v763
    %v894 = vpack.c.b16 %v774, %v764
    %v895 = vpack.c.b16 %v775, %v765
    %v896 = vpack.c.b16 %v776, %v766
    %v897 = vpack.c.b16 %v777, %v767
    %v898 = vpack.c.b16 %v778, %v768
    %v899 = vpack.c.b16 %v779, %v769
    %v900 = vpack.c.b16 %v780, %v770
    %v1159 = vunpack.c.l.b16 %v271
    %v1160 = vunpack.c.l.b16 %v272
    %v1161 = vunpack.c.l.b16 %v273
    %v1162 = vunpack.c.l.b16 %v274
    %v1163 = vunpack.c.l.b16 %v275
    %v1164 = vunpack.c.l.b16 %v276
    %v1165 = vunpack.c.l.b16 %v277
    %v1166 = vunpack.c.l.b16 %v278
    %v1167 = vunpack.c.l.b16 %v279
    %v1168 = vunpack.c.l.b16 %v280
    %v1169 = vunpack.c.l.b16 %v281
    %v1170 = vunpack.c.l.b16 %v282
    %v1171 = vunpack.c.l.b16 %v283
    %v1172 = vunpack.c.l.b16 %v284
    %v1173 = vunpack.c.l.b16 %v285
    %v1174 = vunpack.c.l.b16 %v286
    %v1175 = vunpack.c.l.b16 %v287
    %v1176 = vunpack.c.l.b16 %v288
    %v1177 = vunpack.c.l.b16 %v289
    %v1178 = vunpack.c.l.b16 %v290
    %v1179 = vunpack.c.l.b16 %v291
    %v1180 = vunpack.c.l.b16 %v292
    %v1181 = vunpack.c.l.b16 %v293
    %v1182 = vunpack.c.l.b16 %v294
    %v1183 = vunpack.c.l.b16 %v295
    %v1184 = vunpack.c.l.b16 %v296
    %v1185 = vunpack.c.l.b16 %v297
    %v1186 = vunpack.c.l.b16 %v298
    %v1187 = vunpack.c.l.b16 %v299
    %v1188 = vunpack.c.l.b16 %v300
    %v1189 = vunpack.c.l.b16 %v301
    %v1190 = vunpack.c.l.b16 %v302
    %v1191 = vunpack.c.l.b16 %v303
    %v1192 = vunpack.c.l.b16 %v304
    %v1193 = vunpack.c.l.b16 %v305
    %v1194 = vunpack.c.l.b16 %v306
    %v1195 = vunpack.c.l.b16 %v307
    %v1196 = vunpack.c.l.b16 %v308
    %v1197 = vunpack.c.l.b16 %v309
    %v1198 = vunpack.c.l.b16 %v310
    %v1199 = vunpack.c.l.b16 %v311
    %v1200 = vunpack.c.l.b16 %v312
    %v1201 = vunpack.c.l.b16 %v313
    %v1202 = vunpack.c.l.b16 %v314
    %v1203 = vunpack.c.l.b16 %v315
    %v1204 = vunpack.c.l.b16 %v316
    %v1205 = vunpack.c.l.b16 %v317
    %v1206 = vunpack.c.l.b16 %v318
    %v1207 = vunpack.c.l.b16 %v319
    %v1208 = vunpack.c.l.b16 %v320
    %v1209 = vunpack.c.l.b16 %v321
    %v1210 = vunpack.c.l.b16 %v322
    %v1211 = vunpack.c.l.b16 %v323
    %v1212 = vunpack.c.l.b16 %v324
    %v1213 = vunpack.c.l.b16 %v325
    %v1214 = vunpack.c.l.b16 %v326
    %v1215 = vunpack.c.l.b16 %v327
    %v1216 = vunpack.c.l.b16 %v328
    %v1217 = vunpack.c.l.b16 %v329
    %v1218 = vunpack.c.l.b16 %v330
    %v1219 = vunpack.c.l.b16 %v331
    %v1220 = vunpack.c.l.b16 %v332
    %v1221 = vunpack.c.l.b16 %v333
    %v1222 = vunpack.c.l.b16 %v334
    %v1223 = vunpack.c.l.b16 %v335
    %v1224 = vunpack.c.l.b16 %v336
    %v1225 = vunpack.c.l.b16 %v337
    %v1226 = vunpack.c.l.b16 %v338
    %v1227 = vunpack.c.l.b16 %v339
    %v1228 = vunpack.c.l.b16 %v340
    %v1229 = vunpack.c.l.b16 %v341
    %v1230 = vunpack.c.l.b16 %v342
    %v1231 = vunpack.c.l.b16 %v343
    %v1232 = vunpack.c.l.b16 %v344
    %v1233 = vunpack.c.l.b16 %v345
    %v1234 = vunpack.c.l.b16 %v346
    %v1235 = vunpack.c.l.b16 %v347
    %v1236 = vunpack.c.l.b16 %v348
    %v1237 = vunpack.c.l.b16 %v349
    %v1238 = vunpack.c.l.b16 %v350
    %v1239 = vunpack.c.l.b16 %v351
    %v1240 = vunpack.c.l.b16 %v352
    %v1241 = vunpack.c.l.b16 %v353
    %v1242 = vunpack.c.l.b16 %v354
    %v1243 = vunpack.c.l.b16 %v355
    %v1244 = vunpack.c.l.b16 %v356
    %v1245 = vunpack.c.l.b16 %v357
    %v1246 = vunpack.c.l.b16 %v358
    %v1247 = vunpack.c.l.b16 %v359
    %v1248 = vunpack.c.l.b16 %v360
    %v1249 = vunpack.c.l.b16 %v361
    %v1250 = vunpack.c.l.b16 %v362
    %v1251 = vunpack.c.l.b16 %v363
    %v1252 = vunpack.c.l.b16 %v364
    %v1253 = vunpack.c.l.b16 %v365
    %v1254 = vunpack.c.l.b16 %v366
    %v1255 = vunpack.c.l.b16 %v367
    %v1256 = vunpack.c.l.b16 %v368
    %v1257 = vunpack.c.l.b16 %v369
    %v1258 = vunpack.c.l.b16 %v370
    %v1259 = vunpack.c.l.b16 %v371
    %v1260 = vunpack.c.l.b16 %v372
    %v1261 = vunpack.c.l.b16 %v373
    %v1262 = vunpack.c.l.b16 %v374
    %v1263 = vunpack.c.l.b16 %v375
    %v1264 = vunpack.c.l.b16 %v376
    %v1265 = vunpack.c.l.b16 %v377
    %v1266 = vunpack.c.l.b16 %v378
    %v1267 = vunpack.c.l.b16 %v379
    %v1268 = vunpack.c.l.b16 %v380
    %v1269 = vunpack.c.l.b16 %v381
    %v1270 = vunpack.c.l.b16 %v382
    %v1271 = vunpack.c.l.b16 %v383
    %v1272 = vunpack.c.l.b16 %v384
    %v1273 = vunpack.c.l.b16 %v385
    %v1274 = vunpack.c.l.b16 %v386
    %v1275 = vunpack.c.l.b16 %v387
    %v1276 = vunpack.c.l.b16 %v388
    %v1277 = vunpack.c.l.b16 %v389
    %v1278 = vunpack.c.l.b16 %v390
    %v1279 = vunpack.c.l.b16 %v391
    %v1280 = vunpack.c.l.b16 %v392
    %v1281 = vunpack.c.l.b16 %v393
    %v1282 = vunpack.c.l.b16 %v394
    %v1283 = vunpack.c.l.b16 %v395
    %v1284 = vunpack.c.l.b16 %v396
    %v1285 = vunpack.c.l.b16 %v397
    %v1286 = vunpack.c.l.b16 %v398
    %v1287 = vunpack.c.l.b16 %v399
    %v1288 = vunpack.c.l.b16 %v400
    %v1289 = vunpack.c.l.b16 %v401
    %v1290 = vunpack.c.l.b16 %v402
    %v1291 = vunpack.c.l.b16 %v403
    %v1292 = vunpack.c.l.b16 %v404
    %v1293 = vunpack.c.l.b16 %v405
    %v1294 = vunpack.c.l.b16 %v406
    %v1295 = vunpack.c.l.b16 %v407
    %v1296 = vunpack.c.l.b16 %v408
    %v1297 = vunpack.c.l.b16 %v409
    %v1298 = vunpack.c.l.b16 %v410
    %v1299 = vunpack.c.l.b16 %v411
    %v1300 = vunpack.c.l.b16 %v412
    %v1301 = vunpack.c.l.b16 %v413
    %v1302 = vunpack.c.l.b16 %v414
    %v1303 = vunpack.c.l.b16 %v415
    %v1304 = vunpack.c.l.b16 %v416
    %v1305 = vunpack.c.l.b16 %v417
    %v1306 = vunpack.c.l.b16 %v418
    %v1307 = vunpack.c.l.b16 %v419
    %v1308 = vunpack.c.l.b16 %v420
    %v1309 = vpack.c.b16 %v1160, %v1159
    %v1310 = vpack.c.b16 %v1162, %v1161
    %v1311 = vpack.c.b16 %v1164, %v1163
    %v1312 = vpack.c.b16 %v1166, %v1165
    %v1313 = vpack.c.b16 %v1168, %v1167
    %v1314 = vpack.c.b16 %v1170, %v1169
    %v1315 = vpack.c.b16 %v1172, %v1171
    %v1316 = vpack.c.b16 %v1174, %v1173
    %v1317 = vpack.c.b16 %v1176, %v1175
    %v1318 = vpack.c.b16 %v1178, %v1177
    %v1319 = vpack.c.b16 %v1180, %v1179
    %v1320 = vpack.c.b16 %v1182, %v1181
    %v1321 = vpack.c.b16 %v1184, %v1183
    %v1322 = vpack.c.b16 %v1186, %v1185
    %v1323 = vpack.c.b16 %v1188, %v1187
    %v1324 = vpack.c.b16 %v1190, %v1189
    %v1325 = vpack.c.b16 %v1192, %v1191
    %v1326 = vpack.c.b16 %v1194, %v1193
    %v1327 = vpack.c.b16 %v1196, %v1195
    %v1328 = vpack.c.b16 %v1198, %v1197
    %v1329 = vpack.c.b16 %v1200, %v1199
    %v1330 = vpack.c.b16 %v1202, %v1201
    %v1331 = vpack.c.b16 %v1204, %v1203
    %v1332 = vpack.c.b16 %v1206, %v1205
    %v1333 = vpack.c.b16 %v1208, %v1207
    %v1334 = vpack.c.b16 %v1210, %v1209
    %v1335 = vpack.c.b16 %v1212, %v1211
    %v1336 = vpack.c.b16 %v1214, %v1213
    %v1337 = vpack.c.b16 %v1216, %v1215
    %v1338 = vpack.c.b16 %v1218, %v1217
    %v1339 = vpack.c.b16 %v1220, %v1219
    %v1340 = vpack.c.b16 %v1222, %v1221
    %v1341 = vpack.c.b16 %v1224, %v1223
    %v1342 = vpack.c.b16 %v1226, %v1225
    %v1343 = vpack.c.b16 %v1228, %v1227
    %v1344 = vpack.c.b16 %v1230, %v1229
    %v1345 = vpack.c.b16 %v1232, %v1231
    %v1346 = vpack.c.b16 %v1234, %v1233
    %v1347 = vpack.c.b16 %v1236, %v1235
    %v1348 = vpack.c.b16 %v1238, %v1237
    %v1349 = vpack.c.b16 %v1240, %v1239
    %v1350 = vpack.c.b16 %v1242, %v1241
    %v1351 = vpack.c.b16 %v1244, %v1243
    %v1352 = vpack.c.b16 %v1246, %v1245
    %v1353 = vpack.c.b16 %v1248, %v1247
    %v1354 = vpack.c.b16 %v1250, %v1249
    %v1355 = vpack.c.b16 %v1252, %v1251
    %v1356 = vpack.c.b16 %v1254, %v1253
    %v1357 = vpack.c.b16 %v1256, %v1255
    %v1358 = vpack.c.b16 %v1258, %v1257
    %v1359 = vpack.c.b16 %v1260, %v1259
    %v1360 = vpack.c.b16 %v1262, %v1261
    %v1361 = vpack.c.b16 %v1264, %v1263
    %v1362 = vpack.c.b16 %v1266, %v1265
    %v1363 = vpack.c.b16 %v1268, %v1267
    %v1364 = vpack.c.b16 %v1270, %v1269
    %v1365 = vpack.c.b16 %v1272, %v1271
    %v1366 = vpack.c.b16 %v1274, %v1273
    %v1367 = vpack.c.b16 %v1276, %v1275
    %v1368 = vpack.c.b16 %v1278, %v1277
    %v1369 = vpack.c.b16 %v1280, %v1279
    %v1370 = vpack.c.b16 %v1282, %v1281
    %v1371 = vpack.c.b16 %v1284, %v1283
    %v1372 = vpack.c.b16 %v1286, %v1285
    %v1373 = vpack.c.b16 %v1288, %v1287
    %v1374 = vpack.c.b16 %v1290, %v1289
    %v1375 = vpack.c.b16 %v1292, %v1291
    %v1376 = vpack.c.b16 %v1294, %v1293
    %v1377 = vpack.c.b16 %v1296, %v1295
    %v1378 = vpack.c.b16 %v1298, %v1297
    %v1379 = vpack.c.b16 %v1300, %v1299
    %v1380 = vpack.c.b16 %v1302, %v1301
    %v1381 = vpack.c.b16 %v1304, %v1303
    %v1382 = vpack.c.b16 %v1306, %v1305
    %v1383 = vpack.c.b16 %v1308, %v1307
    %vm1459 = vcmask 392192
    %v1461 = vsel %vm1459, %v790, 0
    %v1464 = vsel %vm1459, %v800, 0
    %v1467 = vsel %vm1459, %v810, 0
    %v1470 = vsel %vm1459, %v820, 0
    %v1473 = vsel %vm1459, %v830, 0
    %v1476 = vsel %vm1459, %v840, 0
    %v1479 = vsel %vm1459, %v850, 0
    %v1482 = vsel %vm1459, %v860, 0
    %v1485 = vsel %vm1459, %v870, 0
    %v1488 = vsel %vm1459, %v880, 0
    %v1491 = vsel %vm1459, %v890, 0
    %v1494 = vsel %vm1459, %v900, 0
    %1496 = vmatprep.subr.bf16.mxu0 0
    %1497 = vmatpush1.bf16.msra.mxu0 %v1309
    %1498 = vmatprep.subr.bf16.mxu0 0
    %1499 = vmatpush1.bf16.msra.mxu0 %v1310
    %1500 = vmatprep.subr.bf16.mxu0 0
    %1501 = vmatpush1.bf16.msra.mxu0 %v1311
    %1502 = vmatprep.subr.bf16.mxu0 0
    %1503 = vmatpush1.bf16.msra.mxu0 %v1312
    %1504 = vmatprep.subr.bf16.mxu0 0
    %1505 = vmatpush1.bf16.msra.mxu0 %v1313
    %1506 = vmatprep.subr.bf16.mxu0 0
    %1507 = vmatpush1.bf16.msra.mxu0 %v1314
    %1508 = vmatprep.subr.bf16.mxu0 0
    %1509 = vmatpush1.bf16.msra.mxu0 %v1315
    %1510 = vmatprep.subr.bf16.mxu0 0
    %1511 = vmatpush1.bf16.msra.mxu0 %v1316
    %1512 = vmatprep.subr.bf16.mxu0 0
    %1513 = vmatpush1.bf16.msra.mxu0 %v1317
    %1514 = vmatprep.subr.bf16.mxu0 0
    %1515 = vmatpush1.bf16.msra.mxu0 %v1318
    %1516 = vmatprep.subr.bf16.mxu0 0
    %1517 = vmatpush1.bf16.msra.mxu0 %v1319
    %1518 = vmatprep.subr.bf16.mxu0 0
    %1519 = vmatpush1.bf16.msra.mxu0 %v1320
    %1520 = vmatprep.subr.bf16.mxu0 0
    %1521 = vmatpush1.bf16.msra.mxu0 %v1321
    %1522 = vmatprep.subr.bf16.mxu0 0
    %1523 = vmatpush1.bf16.msra.mxu0 %v1322
    %1524 = vmatprep.subr.bf16.mxu0 0
    %1525 = vmatpush1.bf16.msra.mxu0 %v1323
    %1526 = vmatprep.subr.bf16.mxu0 0
    %1527 = vmatpush1.bf16.msra.mxu0 %v1324
    %1528 = vmatprep.mubr.bf16.mxu0 %v782
    %1529 = vmatmul.mubr.bf16.gmra.mrb[0].mxu0 %v781
    %v1530 = vpop.f32.mrb[0].mxu0
    %v1531 = vadd.f32 0.0, %v1530
    %v1532 = vpop.f32.mrb[0].mxu0
    %v1533 = vpop.f32.mrb[0].mxu0
    %v1534 = vadd.f32 0.0, %v1533
    %v1535 = vpop.f32.mrb[0].mxu0
    %1536 = vmatprep.mubr.bf16.mxu0 %v792
    %1537 = vmatmul.mubr.bf16.gmra.mrb[0].mxu0 %v791
    %v1538 = vpop.f32.mrb[0].mxu0
    %v1539 = vadd.f32 0.0, %v1538
    %v1540 = vpop.f32.mrb[0].mxu0
    %v1541 = vpop.f32.mrb[0].mxu0
    %v1542 = vadd.f32 0.0, %v1541
    %v1543 = vpop.f32.mrb[0].mxu0
    %1544 = vmatprep.mubr.bf16.mxu0 %v802
    %1545 = vmatmul.mubr.bf16.gmra.mrb[0].mxu0 %v801
    %v1546 = vpop.f32.mrb[0].mxu0
    %v1547 = vadd.f32 0.0, %v1546
    %v1548 = vpop.f32.mrb[0].mxu0
    %v1549 = vpop.f32.mrb[0].mxu0
    %v1550 = vadd.f32 0.0, %v1549
    %v1551 = vpop.f32.mrb[0].mxu0
    %1552 = vmatprep.mubr.bf16.mxu0 %v812
    %1553 = vmatmul.mubr.bf16.gmra.mrb[0].mxu0 %v811
    %v1554 = vpop.f32.mrb[0].mxu0
    %v1555 = vadd.f32 0.0, %v1554
    %v1556 = vpop.f32.mrb[0].mxu0
    %v1557 = vpop.f32.mrb[0].mxu0
    %v1558 = vadd.f32 0.0, %v1557
    %v1559 = vpop.f32.mrb[0].mxu0
    %1560 = vmatprep.mubr.bf16.mxu0 %v822
    %1561 = vmatmul.mubr.bf16.gmra.mrb[0].mxu0 %v821
    %v1562 = vpop.f32.mrb[0].mxu0
    %v1563 = vadd.f32 0.0, %v1562
    %v1564 = vpop.f32.mrb[0].mxu0
    %v1565 = vpop.f32.mrb[0].mxu0
    %v1566 = vadd.f32 0.0, %v1565
    %v1567 = vpop.f32.mrb[0].mxu0
    %1568 = vmatprep.mubr.bf16.mxu0 %v832
    %1569 = vmatmul.mubr.bf16.gmra.mrb[0].mxu0 %v831
    %v1570 = vpop.f32.mrb[0].mxu0
    %v1571 = vadd.f32 0.0, %v1570
    %v1572 = vpop.f32.mrb[0].mxu0
    %v1573 = vpop.f32.mrb[0].mxu0
    %v1574 = vadd.f32 0.0, %v1573
    %v1575 = vpop.f32.mrb[0].mxu0
    %1576 = vmatprep.mubr.bf16.mxu0 %v842
    %1577 = vmatmul.mubr.bf16.gmra.mrb[0].mxu0 %v841
    %v1578 = vpop.f32.mrb[0].mxu0
    %v1579 = vadd.f32 0.0, %v1578
    %v1580 = vpop.f32.mrb[0].mxu0
    %v1581 = vpop.f32.mrb[0].mxu0
    %v1582 = vadd.f32 0.0, %v1581
    %v1583 = vpop.f32.mrb[0].mxu0
    %1584 = vmatprep.mubr.bf16.mxu0 %v852
    %1585 = vmatmul.mubr.bf16.gmra.mrb[0].mxu0 %v851
    %v1586 = vpop.f32.mrb[0].mxu0
    %v1587 = vadd.f32 0.0, %v1586
    %v1588 = vpop.f32.mrb[0].mxu0
    %v1589 = vpop.f32.mrb[0].mxu0
    %v1590 = vadd.f32 0.0, %v1589
    %v1591 = vpop.f32.mrb[0].mxu0
    %1592 = vmatprep.mubr.bf16.mxu0 %v862
    %1593 = vmatmul.mubr.bf16.gmra.mrb[0].mxu0 %v861
    %v1594 = vpop.f32.mrb[0].mxu0
    %v1595 = vadd.f32 0.0, %v1594
    %v1596 = vpop.f32.mrb[0].mxu0
    %v1597 = vpop.f32.mrb[0].mxu0
    %v1598 = vadd.f32 0.0, %v1597
    %v1599 = vpop.f32.mrb[0].mxu0
    %1600 = vmatprep.mubr.bf16.mxu0 %v872
    %1601 = vmatmul.mubr.bf16.gmra.mrb[0].mxu0 %v871
    %v1602 = vpop.f32.mrb[0].mxu0
    %v1603 = vadd.f32 0.0, %v1602
    %v1604 = vpop.f32.mrb[0].mxu0
    %v1605 = vpop.f32.mrb[0].mxu0
    %v1606 = vadd.f32 0.0, %v1605
    %v1607 = vpop.f32.mrb[0].mxu0
    %1608 = vmatprep.mubr.bf16.mxu0 %v882
    %1609 = vmatmul.mubr.bf16.gmra.mrb[0].mxu0 %v881
    %v1610 = vpop.f32.mrb[0].mxu0
    %v1611 = vadd.f32 0.0, %v1610
    %v1612 = vpop.f32.mrb[0].mxu0
    %v1613 = vpop.f32.mrb[0].mxu0
    %v1614 = vadd.f32 0.0, %v1613
    %v1615 = vpop.f32.mrb[0].mxu0
    %1616 = vmatprep.mubr.bf16.mxu0 %v892
    %1617 = vmatmul.mubr.bf16.gmra.mrb[0].mxu0 %v891
    %v1618 = vpop.f32.mrb[0].mxu0
    %v1619 = vadd.f32 0.0, %v1618
    %v1620 = vpop.f32.mrb[0].mxu0
    %v1621 = vpop.f32.mrb[0].mxu0
    %v1622 = vadd.f32 0.0, %v1621
    %v1623 = vpop.f32.mrb[0].mxu0
    %1624 = vdwg.mxu0
    %1625 = vmatprep.subr.bf16.mxu0 0
    %1626 = vmatpush1.bf16.msra.mxu0 %v1325
    %1627 = vmatprep.subr.bf16.mxu0 0
    %1628 = vmatpush1.bf16.msra.mxu0 %v1326
    %1629 = vmatprep.subr.bf16.mxu0 0
    %1630 = vmatpush1.bf16.msra.mxu0 %v1327
    %1631 = vmatprep.subr.bf16.mxu0 0
    %1632 = vmatpush1.bf16.msra.mxu0 %v1328
    %1633 = vmatprep.subr.bf16.mxu0 0
    %1634 = vmatpush1.bf16.msra.mxu0 %v1329
    %1635 = vmatprep.subr.bf16.mxu0 0
    %1636 = vmatpush1.bf16.msra.mxu0 %v1330
    %1637 = vmatprep.subr.bf16.mxu0 0
    %1638 = vmatpush1.bf16.msra.mxu0 %v1331
    %1639 = vmatprep.subr.bf16.mxu0 0
    %1640 = vmatpush1.bf16.msra.mxu0 %v1332
    %1641 = vmatprep.subr.bf16.mxu0 0
    %1642 = vmatpush1.bf16.msra.mxu0 %v1333
    %1643 = vmatprep.subr.bf16.mxu0 0
    %1644 = vmatpush1.bf16.msra.mxu0 %v1334
    %1645 = vmatprep.subr.bf16.mxu0 0
    %1646 = vmatpush1.bf16.msra.mxu0 %v1335
    %1647 = vmatprep.subr.bf16.mxu0 0
    %1648 = vmatpush1.bf16.msra.mxu0 %v1336
    %1649 = vmatprep.subr.bf16.mxu0 0
    %1650 = vmatpush1.bf16.msra.mxu0 %v1337
    %1651 = vmatprep.subr.bf16.mxu0 0
    %1652 = vmatpush1.bf16.msra.mxu0 %v1338
    %1653 = vmatprep.subr.bf16.mxu0 0
    %1654 = vmatpush1.bf16.msra.mxu0 %v1339
    %1655 = vmatprep.subr.bf16.mxu0 0
    %1656 = vmatpush1.bf16.msra.mxu0 %v1340
    %1657 = vmatprep.mubr.bf16.mxu0 %v784
    %1658 = vmatmul.mubr.bf16.gmra.mrb[0].mxu0 %v783
    %v1659 = vpop.f32.mrb[0].mxu0
    %v1660 = vadd.f32 %v1531, %v1659
    %v1661 = vpop.f32.mrb[0].mxu0
    %v1662 = vpop.f32.mrb[0].mxu0
    %v1663 = vadd.f32 %v1534, %v1662
    %v1664 = vpop.f32.mrb[0].mxu0
    %1665 = vmatprep.mubr.bf16.mxu0 %v794
    %1666 = vmatmul.mubr.bf16.gmra.mrb[0].mxu0 %v793
    %v1667 = vpop.f32.mrb[0].mxu0
    %v1668 = vadd.f32 %v1539, %v1667
    %v1669 = vpop.f32.mrb[0].mxu0
    %v1670 = vpop.f32.mrb[0].mxu0
    %v1671 = vadd.f32 %v1542, %v1670
    %v1672 = vpop.f32.mrb[0].mxu0
    %1673 = vmatprep.mubr.bf16.mxu0 %v804
    %1674 = vmatmul.mubr.bf16.gmra.mrb[0].mxu0 %v803
    %v1675 = vpop.f32.mrb[0].mxu0
    %v1676 = vadd.f32 %v1547, %v1675
    %v1677 = vpop.f32.mrb[0].mxu0
    %v1678 = vpop.f32.mrb[0].mxu0
    %v1679 = vadd.f32 %v1550, %v1678
    %v1680 = vpop.f32.mrb[0].mxu0
    %1681 = vmatprep.mubr.bf16.mxu0 %v814
    %1682 = vmatmul.mubr.bf16.gmra.mrb[0].mxu0 %v813
    %v1683 = vpop.f32.mrb[0].mxu0
    %v1684 = vadd.f32 %v1555, %v1683
    %v1685 = vpop.f32.mrb[0].mxu0
    %v1686 = vpop.f32.mrb[0].mxu0
    %v1687 = vadd.f32 %v1558, %v1686
    %v1688 = vpop.f32.mrb[0].mxu0
    %1689 = vmatprep.mubr.bf16.mxu0 %v824
    %1690 = vmatmul.mubr.bf16.gmra.mrb[0].mxu0 %v823
    %v1691 = vpop.f32.mrb[0].mxu0
    %v1692 = vadd.f32 %v1563, %v1691
    %v1693 = vpop.f32.mrb[0].mxu0
    %v1694 = vpop.f32.mrb[0].mxu0
    %v1695 = vadd.f32 %v1566, %v1694
    %v1696 = vpop.f32.mrb[0].mxu0
    %1697 = vmatprep.mubr.bf16.mxu0 %v834
    %1698 = vmatmul.mubr.bf16.gmra.mrb[0].mxu0 %v833
    %v1699 = vpop.f32.mrb[0].mxu0
    %v1700 = vadd.f32 %v1571, %v1699
    %v1701 = vpop.f32.mrb[0].mxu0
    %v1702 = vpop.f32.mrb[0].mxu0
    %v1703 = vadd.f32 %v1574, %v1702
    %v1704 = vpop.f32.mrb[0].mxu0
    %1705 = vmatprep.mubr.bf16.mxu0 %v844
    %1706 = vmatmul.mubr.bf16.gmra.mrb[0].mxu0 %v843
    %v1707 = vpop.f32.mrb[0].mxu0
    %v1708 = vadd.f32 %v1579, %v1707
    %v1709 = vpop.f32.mrb[0].mxu0
    %v1710 = vpop.f32.mrb[0].mxu0
    %v1711 = vadd.f32 %v1582, %v1710
    %v1712 = vpop.f32.mrb[0].mxu0
    %1713 = vmatprep.mubr.bf16.mxu0 %v854
    %1714 = vmatmul.mubr.bf16.gmra.mrb[0].mxu0 %v853
    %v1715 = vpop.f32.mrb[0].mxu0
    %v1716 = vadd.f32 %v1587, %v1715
    %v1717 = vpop.f32.mrb[0].mxu0
    %v1718 = vpop.f32.mrb[0].mxu0
    %v1719 = vadd.f32 %v1590, %v1718
    %v1720 = vpop.f32.mrb[0].mxu0
    %1721 = vmatprep.mubr.bf16.mxu0 %v864
    %1722 = vmatmul.mubr.bf16.gmra.mrb[0].mxu0 %v863
    %v1723 = vpop.f32.mrb[0].mxu0
    %v1724 = vadd.f32 %v1595, %v1723
    %v1725 = vpop.f32.mrb[0].mxu0
    %v1726 = vpop.f32.mrb[0].mxu0
    %v1727 = vadd.f32 %v1598, %v1726
    %v1728 = vpop.f32.mrb[0].mxu0
    %1729 = vmatprep.mubr.bf16.mxu0 %v874
    %1730 = vmatmul.mubr.bf16.gmra.mrb[0].mxu0 %v873
    %v1731 = vpop.f32.mrb[0].mxu0
    %v1732 = vadd.f32 %v1603, %v1731
    %v1733 = vpop.f32.mrb[0].mxu0
    %v1734 = vpop.f32.mrb[0].mxu0
    %v1735 = vadd.f32 %v1606, %v1734
    %v1736 = vpop.f32.mrb[0].mxu0
    %1737 = vmatprep.mubr.bf16.mxu0 %v884
    %1738 = vmatmul.mubr.bf16.gmra.mrb[0].mxu0 %v883
    %v1739 = vpop.f32.mrb[0].mxu0
    %v1740 = vadd.f32 %v1611, %v1739
    %v1741 = vpop.f32.mrb[0].mxu0
    %v1742 = vpop.f32.mrb[0].mxu0
    %v1743 = vadd.f32 %v1614, %v1742
    %v1744 = vpop.f32.mrb[0].mxu0
    %1745 = vmatprep.mubr.bf16.mxu0 %v894
    %1746 = vmatmul.mubr.bf16.gmra.mrb[0].mxu0 %v893
    %v1747 = vpop.f32.mrb[0].mxu0
    %v1748 = vadd.f32 %v1619, %v1747
    %v1749 = vpop.f32.mrb[0].mxu0
    %v1750 = vpop.f32.mrb[0].mxu0
    %v1751 = vadd.f32 %v1622, %v1750
    %v1752 = vpop.f32.mrb[0].mxu0
    %1753 = vdwg.mxu0
    %1754 = vmatprep.subr.bf16.mxu0 0
    %1755 = vmatpush1.bf16.msra.mxu0 %v1341
    %1756 = vmatprep.subr.bf16.mxu0 0
    %1757 = vmatpush1.bf16.msra.mxu0 %v1342
    %1758 = vmatprep.subr.bf16.mxu0 0
    %1759 = vmatpush1.bf16.msra.mxu0 %v1343
    %1760 = vmatprep.subr.bf16.mxu0 0
    %1761 = vmatpush1.bf16.msra.mxu0 %v1344
    %1762 = vmatprep.subr.bf16.mxu0 0
    %1763 = vmatpush1.bf16.msra.mxu0 %v1345
    %1764 = vmatprep.subr.bf16.mxu0 0
    %1765 = vmatpush1.bf16.msra.mxu0 %v1346
    %1766 = vmatprep.subr.bf16.mxu0 0
    %1767 = vmatpush1.bf16.msra.mxu0 %v1347
    %1768 = vmatprep.subr.bf16.mxu0 0
    %1769 = vmatpush1.bf16.msra.mxu0 %v1348
    %1770 = vmatprep.subr.bf16.mxu0 0
    %1771 = vmatpush1.bf16.msra.mxu0 %v1349
    %1772 = vmatprep.subr.bf16.mxu0 0
    %1773 = vmatpush1.bf16.msra.mxu0 %v1350
    %1774 = vmatprep.subr.bf16.mxu0 0
    %1775 = vmatpush1.bf16.msra.mxu0 %v1351
    %1776 = vmatprep.subr.bf16.mxu0 0
    %1777 = vmatpush1.bf16.msra.mxu0 %v1352
    %1778 = vmatprep.subr.bf16.mxu0 0
    %1779 = vmatpush1.bf16.msra.mxu0 %v1353
    %1780 = vmatprep.subr.bf16.mxu0 0
    %1781 = vmatpush1.bf16.msra.mxu0 %v1354
    %1782 = vmatprep.subr.bf16.mxu0 0
    %1783 = vmatpush1.bf16.msra.mxu0 %v1355
    %1784 = vmatprep.subr.bf16.mxu0 0
    %1785 = vmatpush1.bf16.msra.mxu0 %v1356
    %1786 = vmatprep.mubr.bf16.mxu0 %v786
    %1787 = vmatmul.mubr.bf16.gmra.mrb[0].mxu0 %v785
    %v1788 = vpop.f32.mrb[0].mxu0
    %v1789 = vadd.f32 %v1660, %v1788
    %v1790 = vpop.f32.mrb[0].mxu0
    %v1791 = vpop.f32.mrb[0].mxu0
    %v1792 = vadd.f32 %v1663, %v1791
    %v1793 = vpop.f32.mrb[0].mxu0
    %1794 = vmatprep.mubr.bf16.mxu0 %v796
    %1795 = vmatmul.mubr.bf16.gmra.mrb[0].mxu0 %v795
    %v1796 = vpop.f32.mrb[0].mxu0
    %v1797 = vadd.f32 %v1668, %v1796
    %v1798 = vpop.f32.mrb[0].mxu0
    %v1799 = vpop.f32.mrb[0].mxu0
    %v1800 = vadd.f32 %v1671, %v1799
    %v1801 = vpop.f32.mrb[0].mxu0
    %1802 = vmatprep.mubr.bf16.mxu0 %v806
    %1803 = vmatmul.mubr.bf16.gmra.mrb[0].mxu0 %v805
    %v1804 = vpop.f32.mrb[0].mxu0
    %v1805 = vadd.f32 %v1676, %v1804
    %v1806 = vpop.f32.mrb[0].mxu0
    %v1807 = vpop.f32.mrb[0].mxu0
    %v1808 = vadd.f32 %v1679, %v1807
    %v1809 = vpop.f32.mrb[0].mxu0
    %1810 = vmatprep.mubr.bf16.mxu0 %v816
    %1811 = vmatmul.mubr.bf16.gmra.mrb[0].mxu0 %v815
    %v1812 = vpop.f32.mrb[0].mxu0
    %v1813 = vadd.f32 %v1684, %v1812
    %v1814 = vpop.f32.mrb[0].mxu0
    %v1815 = vpop.f32.mrb[0].mxu0
    %v1816 = vadd.f32 %v1687, %v1815
    %v1817 = vpop.f32.mrb[0].mxu0
    %1818 = vmatprep.mubr.bf16.mxu0 %v826
    %1819 = vmatmul.mubr.bf16.gmra.mrb[0].mxu0 %v825
    %v1820 = vpop.f32.mrb[0].mxu0
    %v1821 = vadd.f32 %v1692, %v1820
    %v1822 = vpop.f32.mrb[0].mxu0
    %v1823 = vpop.f32.mrb[0].mxu0
    %v1824 = vadd.f32 %v1695, %v1823
    %v1825 = vpop.f32.mrb[0].mxu0
    %1826 = vmatprep.mubr.bf16.mxu0 %v836
    %1827 = vmatmul.mubr.bf16.gmra.mrb[0].mxu0 %v835
    %v1828 = vpop.f32.mrb[0].mxu0
    %v1829 = vadd.f32 %v1700, %v1828
    %v1830 = vpop.f32.mrb[0].mxu0
    %v1831 = vpop.f32.mrb[0].mxu0
    %v1832 = vadd.f32 %v1703, %v1831
    %v1833 = vpop.f32.mrb[0].mxu0
    %1834 = vmatprep.mubr.bf16.mxu0 %v846
    %1835 = vmatmul.mubr.bf16.gmra.mrb[0].mxu0 %v845
    %v1836 = vpop.f32.mrb[0].mxu0
    %v1837 = vadd.f32 %v1708, %v1836
    %v1838 = vpop.f32.mrb[0].mxu0
    %v1839 = vpop.f32.mrb[0].mxu0
    %v1840 = vadd.f32 %v1711, %v1839
    %v1841 = vpop.f32.mrb[0].mxu0
    %1842 = vmatprep.mubr.bf16.mxu0 %v856
    %1843 = vmatmul.mubr.bf16.gmra.mrb[0].mxu0 %v855
    %v1844 = vpop.f32.mrb[0].mxu0
    %v1845 = vadd.f32 %v1716, %v1844
    %v1846 = vpop.f32.mrb[0].mxu0
    %v1847 = vpop.f32.mrb[0].mxu0
    %v1848 = vadd.f32 %v1719, %v1847
    %v1849 = vpop.f32.mrb[0].mxu0
    %1850 = vmatprep.mubr.bf16.mxu0 %v866
    %1851 = vmatmul.mubr.bf16.gmra.mrb[0].mxu0 %v865
    %v1852 = vpop.f32.mrb[0].mxu0
    %v1853 = vadd.f32 %v1724, %v1852
    %v1854 = vpop.f32.mrb[0].mxu0
    %v1855 = vpop.f32.mrb[0].mxu0
    %v1856 = vadd.f32 %v1727, %v1855
    %v1857 = vpop.f32.mrb[0].mxu0
    %1858 = vmatprep.mubr.bf16.mxu0 %v876
    %1859 = vmatmul.mubr.bf16.gmra.mrb[0].mxu0 %v875
    %v1860 = vpop.f32.mrb[0].mxu0
    %v1861 = vadd.f32 %v1732, %v1860
    %v1862 = vpop.f32.mrb[0].mxu0
    %v1863 = vpop.f32.mrb[0].mxu0
    %v1864 = vadd.f32 %v1735, %v1863
    %v1865 = vpop.f32.mrb[0].mxu0
    %1866 = vmatprep.mubr.bf16.mxu0 %v886
    %1867 = vmatmul.mubr.bf16.gmra.mrb[0].mxu0 %v885
    %v1868 = vpop.f32.mrb[0].mxu0
    %v1869 = vadd.f32 %v1740, %v1868
    %v1870 = vpop.f32.mrb[0].mxu0
    %v1871 = vpop.f32.mrb[0].mxu0
    %v1872 = vadd.f32 %v1743, %v1871
    %v1873 = vpop.f32.mrb[0].mxu0
    %1874 = vmatprep.mubr.bf16.mxu0 %v896
    %1875 = vmatmul.mubr.bf16.gmra.mrb[0].mxu0 %v895
    %v1876 = vpop.f32.mrb[0].mxu0
    %v1877 = vadd.f32 %v1748, %v1876
    %v1878 = vpop.f32.mrb[0].mxu0
    %v1879 = vpop.f32.mrb[0].mxu0
    %v1880 = vadd.f32 %v1751, %v1879
    %v1881 = vpop.f32.mrb[0].mxu0
    %1882 = vdwg.mxu0
    %1883 = vmatprep.subr.bf16.mxu0 0
    %1884 = vmatpush1.bf16.msra.mxu0 %v1357
    %1885 = vmatprep.subr.bf16.mxu0 0
    %1886 = vmatpush1.bf16.msra.mxu0 %v1358
    %1887 = vmatprep.subr.bf16.mxu0 0
    %1888 = vmatpush1.bf16.msra.mxu0 %v1359
    %1889 = vmatprep.subr.bf16.mxu0 0
    %1890 = vmatpush1.bf16.msra.mxu0 %v1360
    %1891 = vmatprep.subr.bf16.mxu0 0
    %1892 = vmatpush1.bf16.msra.mxu0 %v1361
    %1893 = vmatprep.subr.bf16.mxu0 0
    %1894 = vmatpush1.bf16.msra.mxu0 %v1362
    %1895 = vmatprep.subr.bf16.mxu0 0
    %1896 = vmatpush1.bf16.msra.mxu0 %v1363
    %1897 = vmatprep.subr.bf16.mxu0 0
    %1898 = vmatpush1.bf16.msra.mxu0 %v1364
    %1899 = vmatprep.subr.bf16.mxu0 0
    %1900 = vmatpush1.bf16.msra.mxu0 %v1365
    %1901 = vmatprep.subr.bf16.mxu0 0
    %1902 = vmatpush1.bf16.msra.mxu0 %v1366
    %1903 = vmatprep.subr.bf16.mxu0 0
    %1904 = vmatpush1.bf16.msra.mxu0 %v1367
    %1905 = vmatprep.subr.bf16.mxu0 0
    %1906 = vmatpush1.bf16.msra.mxu0 %v1368
    %1907 = vmatprep.subr.bf16.mxu0 0
    %1908 = vmatpush1.bf16.msra.mxu0 %v1369
    %1909 = vmatprep.subr.bf16.mxu0 0
    %1910 = vmatpush1.bf16.msra.mxu0 %v1370
    %1911 = vmatprep.subr.bf16.mxu0 0
    %1912 = vmatpush1.bf16.msra.mxu0 %v1371
    %1913 = vmatprep.subr.bf16.mxu0 0
    %1914 = vmatpush1.bf16.msra.mxu0 %v1372
    %1915 = vmatprep.mubr.bf16.mxu0 %v788
    %1916 = vmatmul.mubr.bf16.gmra.mrb[0].mxu0 %v787
    %v1917 = vpop.f32.mrb[0].mxu0
    %v1918 = vadd.f32 %v1789, %v1917
    %v1919 = vpop.f32.mrb[0].mxu0
    %v1920 = vpop.f32.mrb[0].mxu0
    %v1921 = vadd.f32 %v1792, %v1920
    %v1922 = vpop.f32.mrb[0].mxu0
    %1923 = vmatprep.mubr.bf16.mxu0 %v798
    %1924 = vmatmul.mubr.bf16.gmra.mrb[0].mxu0 %v797
    %v1925 = vpop.f32.mrb[0].mxu0
    %v1926 = vadd.f32 %v1797, %v1925
    %v1927 = vpop.f32.mrb[0].mxu0
    %v1928 = vpop.f32.mrb[0].mxu0
    %v1929 = vadd.f32 %v1800, %v1928
    %v1930 = vpop.f32.mrb[0].mxu0
    %1931 = vmatprep.mubr.bf16.mxu0 %v808
    %1932 = vmatmul.mubr.bf16.gmra.mrb[0].mxu0 %v807
    %v1933 = vpop.f32.mrb[0].mxu0
    %v1934 = vadd.f32 %v1805, %v1933
    %v1935 = vpop.f32.mrb[0].mxu0
    %v1936 = vpop.f32.mrb[0].mxu0
    %v1937 = vadd.f32 %v1808, %v1936
    %v1938 = vpop.f32.mrb[0].mxu0
    %1939 = vmatprep.mubr.bf16.mxu0 %v818
    %1940 = vmatmul.mubr.bf16.gmra.mrb[0].mxu0 %v817
    %v1941 = vpop.f32.mrb[0].mxu0
    %v1942 = vadd.f32 %v1813, %v1941
    %v1943 = vpop.f32.mrb[0].mxu0
    %v1944 = vpop.f32.mrb[0].mxu0
    %v1945 = vadd.f32 %v1816, %v1944
    %v1946 = vpop.f32.mrb[0].mxu0
    %1947 = vmatprep.mubr.bf16.mxu0 %v828
    %1948 = vmatmul.mubr.bf16.gmra.mrb[0].mxu0 %v827
    %v1949 = vpop.f32.mrb[0].mxu0
    %v1950 = vadd.f32 %v1821, %v1949
    %v1951 = vpop.f32.mrb[0].mxu0
    %v1952 = vpop.f32.mrb[0].mxu0
    %v1953 = vadd.f32 %v1824, %v1952
    %v1954 = vpop.f32.mrb[0].mxu0
    %1955 = vmatprep.mubr.bf16.mxu0 %v838
    %1956 = vmatmul.mubr.bf16.gmra.mrb[0].mxu0 %v837
    %v1957 = vpop.f32.mrb[0].mxu0
    %v1958 = vadd.f32 %v1829, %v1957
    %v1959 = vpop.f32.mrb[0].mxu0
    %v1960 = vpop.f32.mrb[0].mxu0
    %v1961 = vadd.f32 %v1832, %v1960
    %v1962 = vpop.f32.mrb[0].mxu0
    %1963 = vmatprep.mubr.bf16.mxu0 %v848
    %1964 = vmatmul.mubr.bf16.gmra.mrb[0].mxu0 %v847
    %v1965 = vpop.f32.mrb[0].mxu0
    %v1966 = vadd.f32 %v1837, %v1965
    %v1967 = vpop.f32.mrb[0].mxu0
    %v1968 = vpop.f32.mrb[0].mxu0
    %v1969 = vadd.f32 %v1840, %v1968
    %v1970 = vpop.f32.mrb[0].mxu0
    %1971 = vmatprep.mubr.bf16.mxu0 %v858
    %1972 = vmatmul.mubr.bf16.gmra.mrb[0].mxu0 %v857
    %v1973 = vpop.f32.mrb[0].mxu0
    %v1974 = vadd.f32 %v1845, %v1973
    %v1975 = vpop.f32.mrb[0].mxu0
    %v1976 = vpop.f32.mrb[0].mxu0
    %v1977 = vadd.f32 %v1848, %v1976
    %v1978 = vpop.f32.mrb[0].mxu0
    %1979 = vmatprep.mubr.bf16.mxu0 %v868
    %1980 = vmatmul.mubr.bf16.gmra.mrb[0].mxu0 %v867
    %v1981 = vpop.f32.mrb[0].mxu0
    %v1982 = vadd.f32 %v1853, %v1981
    %v1983 = vpop.f32.mrb[0].mxu0
    %v1984 = vpop.f32.mrb[0].mxu0
    %v1985 = vadd.f32 %v1856, %v1984
    %v1986 = vpop.f32.mrb[0].mxu0
    %1987 = vmatprep.mubr.bf16.mxu0 %v878
    %1988 = vmatmul.mubr.bf16.gmra.mrb[0].mxu0 %v877
    %v1989 = vpop.f32.mrb[0].mxu0
    %v1990 = vadd.f32 %v1861, %v1989
    %v1991 = vpop.f32.mrb[0].mxu0
    %v1992 = vpop.f32.mrb[0].mxu0
    %v1993 = vadd.f32 %v1864, %v1992
    %v1994 = vpop.f32.mrb[0].mxu0
    %1995 = vmatprep.mubr.bf16.mxu0 %v888
    %1996 = vmatmul.mubr.bf16.gmra.mrb[0].mxu0 %v887
    %v1997 = vpop.f32.mrb[0].mxu0
    %v1998 = vadd.f32 %v1869, %v1997
    %v1999 = vpop.f32.mrb[0].mxu0
    %v2000 = vpop.f32.mrb[0].mxu0
    %v2001 = vadd.f32 %v1872, %v2000
    %v2002 = vpop.f32.mrb[0].mxu0
    %2003 = vmatprep.mubr.bf16.mxu0 %v898
    %2004 = vmatmul.mubr.bf16.gmra.mrb[0].mxu0 %v897
    %v2005 = vpop.f32.mrb[0].mxu0
    %v2006 = vadd.f32 %v1877, %v2005
    %v2007 = vpop.f32.mrb[0].mxu0
    %v2008 = vpop.f32.mrb[0].mxu0
    %v2009 = vadd.f32 %v1880, %v2008
    %v2010 = vpop.f32.mrb[0].mxu0
    %2011 = vdwg.mxu0
    %2012 = vmatprep.subr.bf16.mxu0 0
    %2013 = vmatpush1.bf16.msra.mxu0 %v1373
    %2014 = vmatprep.subr.bf16.mxu0 0
    %2015 = vmatpush1.bf16.msra.mxu0 %v1374
    %2016 = vmatprep.subr.bf16.mxu0 0
    %2017 = vmatpush1.bf16.msra.mxu0 %v1375
    %2018 = vmatprep.subr.bf16.mxu0 0
    %2019 = vmatpush1.bf16.msra.mxu0 %v1376
    %2020 = vmatprep.subr.bf16.mxu0 0
    %2021 = vmatpush1.bf16.msra.mxu0 %v1377
    %2022 = vmatprep.subr.bf16.mxu0 0
    %2023 = vmatpush1.bf16.msra.mxu0 %v1378
    %2024 = vmatprep.subr.bf16.mxu0 0
    %2025 = vmatpush1.bf16.msra.mxu0 %v1379
    %2026 = vmatprep.subr.bf16.mxu0 0
    %2027 = vmatpush1.bf16.msra.mxu0 %v1380
    %2028 = vmatprep.subr.bf16.mxu0 0
    %2029 = vmatpush1.bf16.msra.mxu0 %v1381
    %2030 = vmatprep.subr.bf16.mxu0 0
    %2031 = vmatpush1.bf16.msra.mxu0 %v1382
    %2032 = vmatprep.subr.bf16.mxu0 0
    %2033 = vmatpush1.bf16.msra.mxu0 %v1383
    %2034 = vmatprep.subr.bf16.mxu0 0
    %2035 = vmatpush1.bf16.msra.mxu0 0
    %2036 = vmatprep.subr.bf16.mxu0 0
    %2037 = vmatpush1.bf16.msra.mxu0 0
    %2038 = vmatprep.subr.bf16.mxu0 0
    %2039 = vmatpush1.bf16.msra.mxu0 0
    %2040 = vmatprep.subr.bf16.mxu0 0
    %2041 = vmatpush1.bf16.msra.mxu0 0
    %2042 = vmatprep.subr.bf16.mxu0 0
    %2043 = vmatpush1.bf16.msra.mxu0 0
    %2044 = vmatprep.mubr.bf16.mxu0 %v1461
    %2045 = vmatmul.mubr.bf16.gmra.mrb[0].mxu0 %v789
    %v2046 = vpop.f32.mrb[0].mxu0
    %v2047 = vadd.f32 %v1918, %v2046
    %v2048 = vpop.f32.mrb[0].mxu0
    %v2049 = vpop.f32.mrb[0].mxu0
    %v2050 = vadd.f32 %v1921, %v2049
    %v2051 = vpop.f32.mrb[0].mxu0
    %2052 = vmatprep.mubr.bf16.mxu0 %v1464
    %2053 = vmatmul.mubr.bf16.gmra.mrb[0].mxu0 %v799
    %v2054 = vpop.f32.mrb[0].mxu0
    %v2055 = vadd.f32 %v1926, %v2054
    %v2056 = vpop.f32.mrb[0].mxu0
    %v2057 = vpop.f32.mrb[0].mxu0
    %v2058 = vadd.f32 %v1929, %v2057
    %v2059 = vpop.f32.mrb[0].mxu0
    %2060 = vmatprep.mubr.bf16.mxu0 %v1467
    %2061 = vmatmul.mubr.bf16.gmra.mrb[0].mxu0 %v809
    %v2062 = vpop.f32.mrb[0].mxu0
    %v2063 = vadd.f32 %v1934, %v2062
    %v2064 = vpop.f32.mrb[0].mxu0
    %v2065 = vpop.f32.mrb[0].mxu0
    %v2066 = vadd.f32 %v1937, %v2065
    %v2067 = vpop.f32.mrb[0].mxu0
    %2068 = vmatprep.mubr.bf16.mxu0 %v1470
    %2069 = vmatmul.mubr.bf16.gmra.mrb[0].mxu0 %v819
    %v2070 = vpop.f32.mrb[0].mxu0
    %v2071 = vadd.f32 %v1942, %v2070
    %v2072 = vpop.f32.mrb[0].mxu0
    %v2073 = vpop.f32.mrb[0].mxu0
    %v2074 = vadd.f32 %v1945, %v2073
    %v2075 = vpop.f32.mrb[0].mxu0
    %2076 = vmatprep.mubr.bf16.mxu0 %v1473
    %2077 = vmatmul.mubr.bf16.gmra.mrb[0].mxu0 %v829
    %v2078 = vpop.f32.mrb[0].mxu0
    %v2079 = vadd.f32 %v1950, %v2078
    %v2080 = vpop.f32.mrb[0].mxu0
    %v2081 = vpop.f32.mrb[0].mxu0
    %v2082 = vadd.f32 %v1953, %v2081
    %v2083 = vpop.f32.mrb[0].mxu0
    %2084 = vmatprep.mubr.bf16.mxu0 %v1476
    %2085 = vmatmul.mubr.bf16.gmra.mrb[0].mxu0 %v839
    %v2086 = vpop.f32.mrb[0].mxu0
    %v2087 = vadd.f32 %v1958, %v2086
    %v2088 = vpop.f32.mrb[0].mxu0
    %v2089 = vpop.f32.mrb[0].mxu0
    %v2090 = vadd.f32 %v1961, %v2089
    %v2091 = vpop.f32.mrb[0].mxu0
    %2092 = vmatprep.mubr.bf16.mxu0 %v1479
    %2093 = vmatmul.mubr.bf16.gmra.mrb[0].mxu0 %v849
    %v2094 = vpop.f32.mrb[0].mxu0
    %v2095 = vadd.f32 %v1966, %v2094
    %v2096 = vpop.f32.mrb[0].mxu0
    %v2097 = vpop.f32.mrb[0].mxu0
    %v2098 = vadd.f32 %v1969, %v2097
    %v2099 = vpop.f32.mrb[0].mxu0
    %2100 = vmatprep.mubr.bf16.mxu0 %v1482
    %2101 = vmatmul.mubr.bf16.gmra.mrb[0].mxu0 %v859
    %v2102 = vpop.f32.mrb[0].mxu0
    %v2103 = vadd.f32 %v1974, %v2102
    %v2104 = vpop.f32.mrb[0].mxu0
    %v2105 = vpop.f32.mrb[0].mxu0
    %v2106 = vadd.f32 %v1977, %v2105
    %v2107 = vpop.f32.mrb[0].mxu0
    %2108 = vmatprep.mubr.bf16.mxu0 %v1485
    %2109 = vmatmul.mubr.bf16.gmra.mrb[0].mxu0 %v869
    %v2110 = vpop.f32.mrb[0].mxu0
    %v2111 = vadd.f32 %v1982, %v2110
    %v2112 = vpop.f32.mrb[0].mxu0
    %v2113 = vpop.f32.mrb[0].mxu0
    %v2114 = vadd.f32 %v1985, %v2113
    %v2115 = vpop.f32.mrb[0].mxu0
    %2116 = vmatprep.mubr.bf16.mxu0 %v1488
    %2117 = vmatmul.mubr.bf16.gmra.mrb[0].mxu0 %v879
    %v2118 = vpop.f32.mrb[0].mxu0
    %v2119 = vadd.f32 %v1990, %v2118
    %v2120 = vpop.f32.mrb[0].mxu0
    %v2121 = vpop.f32.mrb[0].mxu0
    %v2122 = vadd.f32 %v1993, %v2121
    %v2123 = vpop.f32.mrb[0].mxu0
    %2124 = vmatprep.mubr.bf16.mxu0 %v1491
    %2125 = vmatmul.mubr.bf16.gmra.mrb[0].mxu0 %v889
    %v2126 = vpop.f32.mrb[0].mxu0
    %v2127 = vadd.f32 %v1998, %v2126
    %v2128 = vpop.f32.mrb[0].mxu0
    %v2129 = vpop.f32.mrb[0].mxu0
    %v2130 = vadd.f32 %v2001, %v2129
    %v2131 = vpop.f32.mrb[0].mxu0
    %2132 = vmatprep.mubr.bf16.mxu0 %v1494
    %2133 = vmatmul.mubr.bf16.gmra.mrb[0].mxu0 %v899
    %v2134 = vpop.f32.mrb[0].mxu0
    %v2135 = vadd.f32 %v2006, %v2134
    %v2136 = vpop.f32.mrb[0].mxu0
    %v2137 = vpop.f32.mrb[0].mxu0
    %v2138 = vadd.f32 %v2009, %v2137
    %v2139 = vpop.f32.mrb[0].mxu0
    %2140 = vdwg.mxu0
    %v2141 = vmax.f32 %v2047, %v2071
    %v2142 = vmax.f32 %v2050, %v2074
    %v2143 = vmax.f32 %v2055, %v2079
    %v2144 = vmax.f32 %v2058, %v2082
    %v2145 = vmax.f32 %v2063, %v2087
    %v2146 = vmax.f32 %v2066, %v2090
    %v2147 = vmax.f32 %v2095, %v2119
    %v2148 = vmax.f32 %v2098, %v2122
    %v2149 = vmax.f32 %v2103, %v2127
    %v2150 = vmax.f32 %v2106, %v2130
    %v2151 = vmax.f32 %v2111, %v2135
    %v2152 = vmax.f32 %v2114, %v2138
    %v2153 = vmax.f32 %v2141, %v2147
    %v2154 = vmax.f32 %v2142, %v2148
    %v2155 = vmax.f32 %v2143, %v2149
    %v2156 = vmax.f32 %v2144, %v2150
    %v2157 = vmax.f32 %v2145, %v2151
    %v2158 = vmax.f32 %v2146, %v2152
    %v2159 = vld [vmem:[%s3] sm:$0x1]
    %v2160 = vlaneseq
    %v2161 = vshrl.u32 %v2160, 7
    %v2162 = vsub.s32 0, %v2161
    %v2163 = vrot.slane %v2159, %v2162
    %v2164 = vadd.f32 %v2153, %v2163
    %v2165 = vadd.f32 %v2154, %v2163
    %v2166 = vadd.f32 %v2155, %v2163
    %v2167 = vadd.f32 %v2156, %v2163
    %v2168 = vadd.f32 %v2157, %v2163
    %v2169 = vadd.f32 %v2158, %v2163
    %v2170 = vmax.f32 %v2164, 0.0
    %v2171 = vmax.f32 %v2165, 0.0
    %v2172 = vmax.f32 %v2166, 0.0
    %v2173 = vmax.f32 %v2167, 0.0
    %v2174 = vmax.f32 %v2168, 0.0
    %v2175 = vmax.f32 %v2169, 0.0
    %v2176 = vpack.c.bf16 %v2171, %v2170
    %v2177 = vpack.c.bf16 %v2173, %v2172
    %v2178 = vpack.c.bf16 %v2175, %v2174
    %v2179 = vld [vmem:[%s2] sm:$0xf]
    %v2180 = vld [vmem:[%s2 + $0x4] sm:$0xf]
    %v2181 = vld [vmem:[%s2 + $0x8] sm:$0xf]
    %v2182 = vld [vmem:[%s2 + $0xc] sm:$0xf]
    %v2183 = vld [vmem:[%s2 + $0x10] sm:$0xf]
    %v2184 = vld [vmem:[%s2 + $0x14] sm:$0xf]
    %v2185 = vld [vmem:[%s2 + $0x18] sm:$0xf]
    %v2186 = vld [vmem:[%s2 + $0x1c] sm:$0xf]
    %v2187 = vld [vmem:[%s2 + $0x20] sm:$0xf]
    %v2188 = vld [vmem:[%s2 + $0x24] sm:$0xf]
    %v2189 = vld [vmem:[%s2 + $0x28] sm:$0xf]
    %v2190 = vld [vmem:[%s2 + $0x2c] sm:$0xf]
    %v2203 = vunpack.c.l.b16 %v2179
    %v2204 = vunpack.c.l.b16 %v2180
    %v2205 = vunpack.c.l.b16 %v2181
    %v2206 = vunpack.c.l.b16 %v2182
    %v2207 = vunpack.c.l.b16 %v2183
    %v2208 = vunpack.c.l.b16 %v2184
    %v2209 = vunpack.c.l.b16 %v2185
    %v2210 = vunpack.c.l.b16 %v2186
    %v2211 = vunpack.c.l.b16 %v2187
    %v2212 = vunpack.c.l.b16 %v2188
    %v2213 = vunpack.c.l.b16 %v2189
    %v2214 = vunpack.c.l.b16 %v2190
    %v2215 = vpack.c.b16 %v2204, %v2203
    %v2216 = vpack.c.b16 %v2206, %v2205
    %v2217 = vpack.c.b16 %v2208, %v2207
    %v2218 = vpack.c.b16 %v2210, %v2209
    %v2219 = vpack.c.b16 %v2212, %v2211
    %v2220 = vpack.c.b16 %v2214, %v2213
    %vm2227 = vcmask 785408
    %v2229 = vsel %vm2227, %v2176, 0
    %v2232 = vsel %vm2227, %v2177, 0
    %v2235 = vsel %vm2227, %v2178, 0
    %2237 = vmatprep.subr.bf16.mxu0 0
    %2238 = vmatpush1.bf16.msra.mxu0 %v2215
    %2239 = vmatprep.subr.bf16.mxu0 0
    %2240 = vmatpush1.bf16.msra.mxu0 %v2216
    %2241 = vmatprep.subr.bf16.mxu0 0
    %2242 = vmatpush1.bf16.msra.mxu0 %v2217
    %2243 = vmatprep.subr.bf16.mxu0 0
    %2244 = vmatpush1.bf16.msra.mxu0 %v2218
    %2245 = vmatprep.subr.bf16.mxu0 0
    %2246 = vmatpush1.bf16.msra.mxu0 %v2219
    %2247 = vmatprep.subr.bf16.mxu0 0
    %2248 = vmatpush1.bf16.msra.mxu0 %v2220
    %2249 = vmatprep.subr.bf16.mxu0 0
    %2250 = vmatpush1.bf16.msra.mxu0 0
    %2251 = vmatprep.subr.bf16.mxu0 0
    %2252 = vmatpush1.bf16.msra.mxu0 0
    %2253 = vmatprep.subr.bf16.mxu0 0
    %2254 = vmatpush1.bf16.msra.mxu0 0
    %2255 = vmatprep.subr.bf16.mxu0 0
    %2256 = vmatpush1.bf16.msra.mxu0 0
    %2257 = vmatprep.subr.bf16.mxu0 0
    %2258 = vmatpush1.bf16.msra.mxu0 0
    %2259 = vmatprep.subr.bf16.mxu0 0
    %2260 = vmatpush1.bf16.msra.mxu0 0
    %2261 = vmatprep.subr.bf16.mxu0 0
    %2262 = vmatpush1.bf16.msra.mxu0 0
    %2263 = vmatprep.subr.bf16.mxu0 0
    %2264 = vmatpush1.bf16.msra.mxu0 0
    %2265 = vmatprep.subr.bf16.mxu0 0
    %2266 = vmatpush1.bf16.msra.mxu0 0
    %2267 = vmatprep.subr.bf16.mxu0 0
    %2268 = vmatpush1.bf16.msra.mxu0 0
    %2269 = vmatprep.mubr.bf16.mxu0 0
    %2270 = vmatmul.mubr.bf16.gmra.mrb[0].mxu0 %v2229
    %v2271 = vpop.f32.mrb[0].mxu0
    %v2272 = vadd.f32 0.0, %v2271
    %v2273 = vpop.f32.mrb[0].mxu0
    %v2274 = vpop.f32.mrb[0].mxu0
    %v2275 = vadd.f32 0.0, %v2274
    %v2276 = vpop.f32.mrb[0].mxu0
    %2277 = vmatprep.mubr.bf16.mxu0 0
    %2278 = vmatmul.mubr.bf16.gmra.mrb[0].mxu0 %v2232
    %v2279 = vpop.f32.mrb[0].mxu0
    %v2280 = vadd.f32 0.0, %v2279
    %v2281 = vpop.f32.mrb[0].mxu0
    %v2282 = vpop.f32.mrb[0].mxu0
    %v2283 = vadd.f32 0.0, %v2282
    %v2284 = vpop.f32.mrb[0].mxu0
    %2285 = vmatprep.mubr.bf16.mxu0 0
    %2286 = vmatmul.mubr.bf16.gmra.mrb[0].mxu0 %v2235
    %v2287 = vpop.f32.mrb[0].mxu0
    %v2288 = vadd.f32 0.0, %v2287
    %v2289 = vpop.f32.mrb[0].mxu0
    %v2290 = vpop.f32.mrb[0].mxu0
    %v2291 = vadd.f32 0.0, %v2290
    %v2292 = vpop.f32.mrb[0].mxu0
    %2293 = vdwg.mxu0
    %2300 = vrot.lane.b32.xlu0 %v2272, 112
    %v2301 = vpop.permute.xlu0 %2300
    %2302 = vrot.lane.b32.xlu0 %v2275, 112
    %v2303 = vpop.permute.xlu0 %2302
    %2304 = vrot.lane.b32.xlu0 %v2280, 112
    %v2305 = vpop.permute.xlu0 %2304
    %2306 = vrot.lane.b32.xlu0 %v2283, 112
    %v2307 = vpop.permute.xlu0 %2306
    %2308 = vrot.lane.b32.xlu0 %v2288, 112
    %v2309 = vpop.permute.xlu0 %2308
    %2310 = vrot.lane.b32.xlu0 %v2291, 112
    %v2311 = vpop.permute.xlu0 %2310
    %v2318 = vmax.f32 %v2272, %v2301
    %v2319 = vmax.f32 %v2275, %v2303
    %v2320 = vmax.f32 %v2280, %v2305
    %v2321 = vmax.f32 %v2283, %v2307
    %v2322 = vmax.f32 %v2288, %v2309
    %v2323 = vmax.f32 %v2291, %v2311
    %2330 = vrot.lane.b32.xlu0 %v2318, 96
    %v2331 = vpop.permute.xlu0 %2330
    %2332 = vrot.lane.b32.xlu0 %v2319, 96
    %v2333 = vpop.permute.xlu0 %2332
    %2334 = vrot.lane.b32.xlu0 %v2320, 96
    %v2335 = vpop.permute.xlu0 %2334
    %2336 = vrot.lane.b32.xlu0 %v2321, 96
    %v2337 = vpop.permute.xlu0 %2336
    %2338 = vrot.lane.b32.xlu0 %v2322, 96
    %v2339 = vpop.permute.xlu0 %2338
    %2340 = vrot.lane.b32.xlu0 %v2323, 96
    %v2341 = vpop.permute.xlu0 %2340
    %v2348 = vmax.f32 %v2318, %v2331
    %v2349 = vmax.f32 %v2319, %v2333
    %v2350 = vmax.f32 %v2320, %v2335
    %v2351 = vmax.f32 %v2321, %v2337
    %v2352 = vmax.f32 %v2322, %v2339
    %v2353 = vmax.f32 %v2323, %v2341
    %v2354 = vld [vmem:[%s3 + $0x1] sm:$0x1]
    %v2355 = vlaneseq
    %v2356 = vshrl.u32 %v2355, 7
    %v2357 = vsub.s32 0, %v2356
    %v2358 = vrot.slane %v2354, %v2357
    %v2359 = vadd.f32 %v2348, %v2358
    %v2360 = vadd.f32 %v2349, %v2358
    %v2361 = vadd.f32 %v2350, %v2358
    %v2362 = vadd.f32 %v2351, %v2358
    %v2363 = vadd.f32 %v2352, %v2358
    %v2364 = vadd.f32 %v2353, %v2358
    %v2365 = vmax.f32 %v2359, 0.0
    %v2366 = vmax.f32 %v2360, 0.0
    %v2367 = vmax.f32 %v2361, 0.0
    %v2368 = vmax.f32 %v2362, 0.0
    %v2369 = vmax.f32 %v2363, 0.0
    %v2370 = vmax.f32 %v2364, 0.0
    %v2371 = vpack.c.bf16 %v2366, %v2365
    %v2372 = vpack.c.bf16 %v2368, %v2367
    %v2373 = vpack.c.bf16 %v2370, %v2369
    %v2374 = vld [vmem:[%s2 + $0x30] sm:$0xf]
    %v2375 = vld [vmem:[%s2 + $0x34] sm:$0xf]
    %v2376 = vld [vmem:[%s3 + $0x2] sm:$0x1]
    %v2377 = vlaneseq
    %v2378 = vshrl.u32 %v2377, 7
    %v2379 = vsub.s32 0, %v2378
    %v2380 = vrot.slane %v2376, %v2379
    %v2383 = vunpack.c.l.b16 %v2374
    %v2384 = vunpack.c.l.b16 %v2375
    %v2385 = vpack.c.b16 %v2384, %v2383
    %vm2387 = vcmask 130048
    %v2389 = vsel %vm2387, %v2371, 0
    %v2392 = vsel %vm2387, %v2372, 0
    %v2395 = vsel %vm2387, %v2373, 0
    %2397 = vmatprep.subr.bf16.mxu0 0
    %2398 = vmatpush1.bf16.msra.mxu0 %v2385
    %2399 = vmatprep.subr.bf16.mxu0 0
    %2400 = vmatpush1.bf16.msra.mxu0 0
    %2401 = vmatprep.subr.bf16.mxu0 0
    %2402 = vmatpush1.bf16.msra.mxu0 0
    %2403 = vmatprep.subr.bf16.mxu0 0
    %2404 = vmatpush1.bf16.msra.mxu0 0
    %2405 = vmatprep.subr.bf16.mxu0 0
    %2406 = vmatpush1.bf16.msra.mxu0 0
    %2407 = vmatprep.subr.bf16.mxu0 0
    %2408 = vmatpush1.bf16.msra.mxu0 0
    %2409 = vmatprep.subr.bf16.mxu0 0
    %2410 = vmatpush1.bf16.msra.mxu0 0
    %2411 = vmatprep.subr.bf16.mxu0 0
    %2412 = vmatpush1.bf16.msra.mxu0 0
    %2413 = vmatprep.subr.bf16.mxu0 0
    %2414 = vmatpush1.bf16.msra.mxu0 0
    %2415 = vmatprep.subr.bf16.mxu0 0
    %2416 = vmatpush1.bf16.msra.mxu0 0
    %2417 = vmatprep.subr.bf16.mxu0 0
    %2418 = vmatpush1.bf16.msra.mxu0 0
    %2419 = vmatprep.subr.bf16.mxu0 0
    %2420 = vmatpush1.bf16.msra.mxu0 0
    %2421 = vmatprep.subr.bf16.mxu0 0
    %2422 = vmatpush1.bf16.msra.mxu0 0
    %2423 = vmatprep.subr.bf16.mxu0 0
    %2424 = vmatpush1.bf16.msra.mxu0 0
    %2425 = vmatprep.subr.bf16.mxu0 0
    %2426 = vmatpush1.bf16.msra.mxu0 0
    %2427 = vmatprep.subr.bf16.mxu0 0
    %2428 = vmatpush1.bf16.msra.mxu0 0
    %2429 = vmatprep.mubr.bf16.mxu0 0
    %2430 = vmatmul.mubr.bf16.gmra.mrb[0].mxu0 %v2389
    %v2431 = vpop.f32.mrb[0].mxu0
    %v2432 = vadd.f32 %v2380, %v2431
    %v2433 = vpop.f32.mrb[0].mxu0
    %v2434 = vpop.f32.mrb[0].mxu0
    %v2435 = vadd.f32 %v2380, %v2434
    %v2436 = vpop.f32.mrb[0].mxu0
    %2437 = vmatprep.mubr.bf16.mxu0 0
    %2438 = vmatmul.mubr.bf16.gmra.mrb[0].mxu0 %v2392
    %v2439 = vpop.f32.mrb[0].mxu0
    %v2440 = vadd.f32 %v2380, %v2439
    %v2441 = vpop.f32.mrb[0].mxu0
    %v2442 = vpop.f32.mrb[0].mxu0
    %v2443 = vadd.f32 %v2380, %v2442
    %v2444 = vpop.f32.mrb[0].mxu0
    %2445 = vmatprep.mubr.bf16.mxu0 0
    %2446 = vmatmul.mubr.bf16.gmra.mrb[0].mxu0 %v2395
    %v2447 = vpop.f32.mrb[0].mxu0
    %v2448 = vadd.f32 %v2380, %v2447
    %v2449 = vpop.f32.mrb[0].mxu0
    %v2450 = vpop.f32.mrb[0].mxu0
    %v2451 = vadd.f32 %v2380, %v2450
    %v2452 = vpop.f32.mrb[0].mxu0
    %2453 = vdwg.mxu0
    %v2454 = vmax.f32 %v2432, 0.0
    %v2455 = vmax.f32 %v2435, 0.0
    %v2456 = vmax.f32 %v2440, 0.0
    %v2457 = vmax.f32 %v2443, 0.0
    %v2458 = vmax.f32 %v2448, 0.0
    %v2459 = vmax.f32 %v2451, 0.0
    %v2460 = vpack.c.bf16 %v2455, %v2454
    %v2461 = vpack.c.bf16 %v2457, %v2456
    %v2462 = vpack.c.bf16 %v2459, %v2458
    %v2463 = vld [vmem:[%s2 + $0x38] sm:$0xf]
    %v2464 = vld [vmem:[%s2 + $0x3c] sm:$0xf]
    %v2465 = vld [vmem:[%s2 + $0x40] sm:$0xf]
    %v2466 = vld [vmem:[%s2 + $0x44] sm:$0xf]
    %v2467 = vld [vmem:[%s2 + $0x48] sm:$0xf]
    %v2468 = vld [vmem:[%s2 + $0x4c] sm:$0xf]
    %v2469 = vld [vmem:[%s2 + $0x50] sm:$0xf]
    %v2470 = vld [vmem:[%s2 + $0x54] sm:$0xf]
    %v2471 = vld [vmem:[%s2 + $0x58] sm:$0xf]
    %v2472 = vld [vmem:[%s2 + $0x5c] sm:$0xf]
    %v2473 = vld [vmem:[%s2 + $0x60] sm:$0xf]
    %v2474 = vld [vmem:[%s2 + $0x64] sm:$0xf]
    %v2475 = vld [vmem:[%s2 + $0x68] sm:$0xf]
    %v2476 = vld [vmem:[%s2 + $0x6c] sm:$0xf]
    %v2477 = vld [vmem:[%s2 + $0x70] sm:$0xf]
    %v2478 = vld [vmem:[%s3 + $0x3] sm:$0x1]
    %v2479 = vlaneseq
    %v2480 = vshrl.u32 %v2479, 7
    %v2481 = vsub.s32 0, %v2480
    %v2482 = vrot.slane %v2478, %v2481
    %v2498 = vunpack.c.l.b16 %v2463
    %v2499 = vunpack.c.l.b16 %v2464
    %v2500 = vunpack.c.l.b16 %v2465
    %v2501 = vunpack.c.l.b16 %v2466
    %v2502 = vunpack.c.l.b16 %v2467
    %v2503 = vunpack.c.l.b16 %v2468
    %v2504 = vunpack.c.l.b16 %v2469
    %v2505 = vunpack.c.l.b16 %v2470
    %v2506 = vunpack.c.l.b16 %v2471
    %v2507 = vunpack.c.l.b16 %v2472
    %v2508 = vunpack.c.l.b16 %v2473
    %v2509 = vunpack.c.l.b16 %v2474
    %v2510 = vunpack.c.l.b16 %v2475
    %v2511 = vunpack.c.l.b16 %v2476
    %v2512 = vunpack.c.l.b16 %v2477
    %v2513 = vpack.c.b16 %v2499, %v2498
    %v2514 = vpack.c.b16 %v2501, %v2500
    %v2515 = vpack.c.b16 %v2503, %v2502
    %v2516 = vpack.c.b16 %v2505, %v2504
    %v2517 = vpack.c.b16 %v2507, %v2506
    %v2518 = vpack.c.b16 %v2509, %v2508
    %v2519 = vpack.c.b16 %v2511, %v2510
    %v2520 = vpack.c.b16 %v2512, %v2512
    %vm2528 = vcmask 982016
    %v2530 = vsel %vm2528, %v2460, 0
    %v2533 = vsel %vm2528, %v2461, 0
    %v2536 = vsel %vm2528, %v2462, 0
    %vm2538 = vcmask 1043456
    %v2540 = vsel %vm2538, %v2520, 0
    %2542 = vmatprep.subr.bf16.mxu0 0
    %2543 = vmatpush1.bf16.msra.mxu0 %v2513
    %2544 = vmatprep.subr.bf16.mxu0 0
    %2545 = vmatpush1.bf16.msra.mxu0 %v2514
    %2546 = vmatprep.subr.bf16.mxu0 0
    %2547 = vmatpush1.bf16.msra.mxu0 %v2515
    %2548 = vmatprep.subr.bf16.mxu0 0
    %2549 = vmatpush1.bf16.msra.mxu0 %v2516
    %2550 = vmatprep.subr.bf16.mxu0 0
    %2551 = vmatpush1.bf16.msra.mxu0 %v2517
    %2552 = vmatprep.subr.bf16.mxu0 0
    %2553 = vmatpush1.bf16.msra.mxu0 %v2518
    %2554 = vmatprep.subr.bf16.mxu0 0
    %2555 = vmatpush1.bf16.msra.mxu0 %v2519
    %2556 = vmatprep.subr.bf16.mxu0 0
    %2557 = vmatpush1.bf16.msra.mxu0 %v2540
    %2558 = vmatprep.subr.bf16.mxu0 0
    %2559 = vmatpush1.bf16.msra.mxu0 0
    %2560 = vmatprep.subr.bf16.mxu0 0
    %2561 = vmatpush1.bf16.msra.mxu0 0
    %2562 = vmatprep.subr.bf16.mxu0 0
    %2563 = vmatpush1.bf16.msra.mxu0 0
    %2564 = vmatprep.subr.bf16.mxu0 0
    %2565 = vmatpush1.bf16.msra.mxu0 0
    %2566 = vmatprep.subr.bf16.mxu0 0
    %2567 = vmatpush1.bf16.msra.mxu0 0
    %2568 = vmatprep.subr.bf16.mxu0 0
    %2569 = vmatpush1.bf16.msra.mxu0 0
    %2570 = vmatprep.subr.bf16.mxu0 0
    %2571 = vmatpush1.bf16.msra.mxu0 0
    %2572 = vmatprep.subr.bf16.mxu0 0
    %2573 = vmatpush1.bf16.msra.mxu0 0
    %2574 = vmatprep.mubr.bf16.mxu0 0
    %2575 = vmatmul.mubr.bf16.gmra.mrb[0].mxu0 %v2530
    %v2576 = vpop.f32.mrb[0].mxu0
    %v2577 = vadd.f32 %v2482, %v2576
    %v2578 = vpop.f32.mrb[0].mxu0
    %v2579 = vpop.f32.mrb[0].mxu0
    %v2580 = vadd.f32 %v2482, %v2579
    %v2581 = vpop.f32.mrb[0].mxu0
    %2582 = vmatprep.mubr.bf16.mxu0 0
    %2583 = vmatmul.mubr.bf16.gmra.mrb[0].mxu0 %v2533
    %v2584 = vpop.f32.mrb[0].mxu0
    %v2585 = vadd.f32 %v2482, %v2584
    %v2586 = vpop.f32.mrb[0].mxu0
    %v2587 = vpop.f32.mrb[0].mxu0
    %v2588 = vadd.f32 %v2482, %v2587
    %v2589 = vpop.f32.mrb[0].mxu0
    %2590 = vmatprep.mubr.bf16.mxu0 0
    %2591 = vmatmul.mubr.bf16.gmra.mrb[0].mxu0 %v2536
    %v2592 = vpop.f32.mrb[0].mxu0
    %v2593 = vadd.f32 %v2482, %v2592
    %v2594 = vpop.f32.mrb[0].mxu0
    %v2595 = vpop.f32.mrb[0].mxu0
    %v2596 = vadd.f32 %v2482, %v2595
    %v2597 = vpop.f32.mrb[0].mxu0
    %2598 = vdwg.mxu0
    %v2599 = vmax.f32 %v2577, 0.0
    %v2600 = vmax.f32 %v2580, 0.0
    %v2601 = vmax.f32 %v2585, 0.0
    %v2602 = vmax.f32 %v2588, 0.0
    %v2603 = vmax.f32 %v2593, 0.0
    %v2604 = vmax.f32 %v2596, 0.0
    %v2605 = vld [vmem:[#allocation14] sm:$0xff]
    %v2606 = vld [vmem:[#allocation14 + $0x8] sm:$0xff]
    %v2607 = vld [vmem:[%s3 + $0x8] sm:$0xff]
    %v2608 = vld [vmem:[%s3 + $0x10] sm:$0x1]
    %v2609 = vld [vmem:[%s3 + $0x4] sm:$0x1]
    %v2610 = vlaneseq
    %v2611 = vshrl.u32 %v2610, 7
    %v2612 = vsub.s32 0, %v2611
    %v2613 = vrot.slane %v2609, %v2612
    %vm2614 = vcmask 72704
    %v2616 = vsel %vm2614, %v2605, 0
    %v2619 = vsel %vm2614, %v2606, 0
    %vm2621 = vcmask 1040384
    %v2623 = vsel %vm2621, %v2608, 0
    %2625 = vmatprep.subr.mxu0 0.0
    %2626 = vmatpush1.msra.mxu0 %v2607
    %2627 = vmatprep.subr.mxu0 0.0
    %2628 = vmatpush1.msra.mxu0 %v2623
    %2629 = vmatprep.subr.mxu0 0.0
    %2630 = vmatpush1.msra.mxu0 0.0
    %2631 = vmatprep.subr.mxu0 0.0
    %2632 = vmatpush1.msra.mxu0 0.0
    %2633 = vmatprep.subr.mxu0 0.0
    %2634 = vmatpush1.msra.mxu0 0.0
    %2635 = vmatprep.subr.mxu0 0.0
    %2636 = vmatpush1.msra.mxu0 0.0
    %2637 = vmatprep.subr.mxu0 0.0
    %2638 = vmatpush1.msra.mxu0 0.0
    %2639 = vmatprep.subr.mxu0 0.0
    %2640 = vmatpush1.msra.mxu0 0.0
    %2641 = vmatprep.subr.mxu0 0.0
    %2642 = vmatpush1.msra.mxu0 0.0
    %2643 = vmatprep.subr.mxu0 0.0
    %2644 = vmatpush1.msra.mxu0 0.0
    %2645 = vmatprep.subr.mxu0 0.0
    %2646 = vmatpush1.msra.mxu0 0.0
    %2647 = vmatprep.subr.mxu0 0.0
    %2648 = vmatpush1.msra.mxu0 0.0
    %2649 = vmatprep.subr.mxu0 0.0
    %2650 = vmatpush1.msra.mxu0 0.0
    %2651 = vmatprep.subr.mxu0 0.0
    %2652 = vmatpush1.msra.mxu0 0.0
    %2653 = vmatprep.subr.mxu0 0.0
    %2654 = vmatpush1.msra.mxu0 0.0
    %2655 = vmatprep.subr.mxu0 0.0
    %2656 = vmatpush1.msra.mxu0 0.0
    %2657 = vmatprep.subr.mxu0 0.0
    %2658 = vmatpush1.msra.mxu0 0.0
    %2659 = vmatprep.subr.mxu0 0.0
    %2660 = vmatpush1.msra.mxu0 0.0
    %2661 = vmatprep.subr.mxu0 0.0
    %2662 = vmatpush1.msra.mxu0 0.0
    %2663 = vmatprep.subr.mxu0 0.0
    %2664 = vmatpush1.msra.mxu0 0.0
    %2665 = vmatprep.subr.mxu0 0.0
    %2666 = vmatpush1.msra.mxu0 0.0
    %2667 = vmatprep.subr.mxu0 0.0
    %2668 = vmatpush1.msra.mxu0 0.0
    %2669 = vmatprep.subr.mxu0 0.0
    %2670 = vmatpush1.msra.mxu0 0.0
    %2671 = vmatprep.subr.mxu0 0.0
    %2672 = vmatpush1.msra.mxu0 0.0
    %2673 = vmatprep.subr.mxu0 0.0
    %2674 = vmatpush1.msra.mxu0 0.0
    %2675 = vmatprep.subr.mxu0 0.0
    %2676 = vmatpush1.msra.mxu0 0.0
    %2677 = vmatprep.subr.mxu0 0.0
    %2678 = vmatpush1.msra.mxu0 0.0
    %2679 = vmatprep.subr.mxu0 0.0
    %2680 = vmatpush1.msra.mxu0 0.0
    %2681 = vmatprep.subr.mxu0 0.0
    %2682 = vmatpush1.msra.mxu0 0.0
    %2683 = vmatprep.subr.mxu0 0.0
    %2684 = vmatpush1.msra.mxu0 0.0
    %2685 = vmatprep.subr.mxu0 0.0
    %2686 = vmatpush1.msra.mxu0 0.0
    %2687 = vmatprep.subr.mxu0 0.0
    %2688 = vmatpush1.msra.mxu0 0.0
    %2689 = vmatprep.mubr.f32.mxu0 0.0
    %2690 = vmatmul.mubr.f32.gmra.mrb[0].mxu0 %v2616
    %v2691 = vpop.f32.mrb[0].mxu0
    %v2692 = vadd.f32 %v2613, %v2691
    %v2693 = vpop.f32.mrb[0].mxu0
    %2694 = vmatprep.mubr.f32.mxu0 0.0
    %2695 = vmatmul.mubr.f32.gmra.mrb[0].mxu0 %v2619
    %v2696 = vpop.f32.mrb[0].mxu0
    %v2697 = vadd.f32 %v2613, %v2696
    %v2698 = vpop.f32.mrb[0].mxu0
    %2699 = vdwg.mxu0
    %v2700 = vmax.f32 %v2697, 0.0
    %v2701 = vld [vmem:[%s3 + $0x18] sm:$0xff]
    %v2702 = vadd.f32 %v2599, %v2692
    %v2703 = vld [vmem:[%s3 + $0x20] sm:$0xff]
    %vm2704 = vcmask 64512
    %v2706 = vsel %vm2704, %v2703, 0
    %2708 = vmatprep.subr.mxu0 0.0
    %2709 = vmatpush1.msra.mxu0 %v2700
    %2710 = vmatprep.subr.mxu0 0.0
    %2711 = vmatpush1.msra.mxu0 0.0
    %2712 = vmatprep.subr.mxu0 0.0
    %2713 = vmatpush1.msra.mxu0 0.0
    %2714 = vmatprep.subr.mxu0 0.0
    %2715 = vmatpush1.msra.mxu0 0.0
    %2716 = vmatprep.subr.mxu0 0.0
    %2717 = vmatpush1.msra.mxu0 0.0
    %2718 = vmatprep.subr.mxu0 0.0
    %2719 = vmatpush1.msra.mxu0 0.0
    %2720 = vmatprep.subr.mxu0 0.0
    %2721 = vmatpush1.msra.mxu0 0.0
    %2722 = vmatprep.subr.mxu0 0.0
    %2723 = vmatpush1.msra.mxu0 0.0
    %2724 = vmatprep.subr.mxu0 0.0
    %2725 = vmatpush1.msra.mxu0 0.0
    %2726 = vmatprep.subr.mxu0 0.0
    %2727 = vmatpush1.msra.mxu0 0.0
    %2728 = vmatprep.subr.mxu0 0.0
    %2729 = vmatpush1.msra.mxu0 0.0
    %2730 = vmatprep.subr.mxu0 0.0
    %2731 = vmatpush1.msra.mxu0 0.0
    %2732 = vmatprep.subr.mxu0 0.0
    %2733 = vmatpush1.msra.mxu0 0.0
    %2734 = vmatprep.subr.mxu0 0.0
    %2735 = vmatpush1.msra.mxu0 0.0
    %2736 = vmatprep.subr.mxu0 0.0
    %2737 = vmatpush1.msra.mxu0 0.0
    %2738 = vmatprep.subr.mxu0 0.0
    %2739 = vmatpush1.msra.mxu0 0.0
    %2740 = vmatprep.subr.mxu0 0.0
    %2741 = vmatpush1.msra.mxu0 0.0
    %2742 = vmatprep.subr.mxu0 0.0
    %2743 = vmatpush1.msra.mxu0 0.0
    %2744 = vmatprep.subr.mxu0 0.0
    %2745 = vmatpush1.msra.mxu0 0.0
    %2746 = vmatprep.subr.mxu0 0.0
    %2747 = vmatpush1.msra.mxu0 0.0
    %2748 = vmatprep.subr.mxu0 0.0
    %2749 = vmatpush1.msra.mxu0 0.0
    %2750 = vmatprep.subr.mxu0 0.0
    %2751 = vmatpush1.msra.mxu0 0.0
    %2752 = vmatprep.subr.mxu0 0.0
    %2753 = vmatpush1.msra.mxu0 0.0
    %2754 = vmatprep.subr.mxu0 0.0
    %2755 = vmatpush1.msra.mxu0 0.0
    %2756 = vmatprep.subr.mxu0 0.0
    %2757 = vmatpush1.msra.mxu0 0.0
    %2758 = vmatprep.subr.mxu0 0.0
    %2759 = vmatpush1.msra.mxu0 0.0
    %2760 = vmatprep.subr.mxu0 0.0
    %2761 = vmatpush1.msra.mxu0 0.0
    %2762 = vmatprep.subr.mxu0 0.0
    %2763 = vmatpush1.msra.mxu0 0.0
    %2764 = vmatprep.subr.mxu0 0.0
    %2765 = vmatpush1.msra.mxu0 0.0
    %2766 = vmatprep.subr.mxu0 0.0
    %2767 = vmatpush1.msra.mxu0 0.0
    %2768 = vmatprep.subr.mxu0 0.0
    %2769 = vmatpush1.msra.mxu0 0.0
    %2770 = vmatprep.subr.mxu0 0.0
    %2771 = vmatpush1.msra.mxu0 0.0
    %2772 = vmatprep.mubr.f32.mxu0 0.0
    %2773 = vmatmul.mubr.f32.gmra.mrb[0].mxu0 %v2706
    %v2774 = vpop.f32.mrb[0].mxu0
    %v2775 = vadd.f32 0.0, %v2774
    %v2776 = vpop.f32.mrb[0].mxu0
    %2777 = vdwg.mxu0
    %v2779 = vsel %vm2704, %v2701, 0
    %2781 = vmatprep.subr.mxu0 0.0
    %2782 = vmatpush1.msra.mxu0 %v2702
    %2783 = vmatprep.subr.mxu0 0.0
    %2784 = vmatpush1.msra.mxu0 0.0
    %2785 = vmatprep.subr.mxu0 0.0
    %2786 = vmatpush1.msra.mxu0 0.0
    %2787 = vmatprep.subr.mxu0 0.0
    %2788 = vmatpush1.msra.mxu0 0.0
    %2789 = vmatprep.subr.mxu0 0.0
    %2790 = vmatpush1.msra.mxu0 0.0
    %2791 = vmatprep.subr.mxu0 0.0
    %2792 = vmatpush1.msra.mxu0 0.0
    %2793 = vmatprep.subr.mxu0 0.0
    %2794 = vmatpush1.msra.mxu0 0.0
    %2795 = vmatprep.subr.mxu0 0.0
    %2796 = vmatpush1.msra.mxu0 0.0
    %2797 = vmatprep.subr.mxu0 0.0
    %2798 = vmatpush1.msra.mxu0 0.0
    %2799 = vmatprep.subr.mxu0 0.0
    %2800 = vmatpush1.msra.mxu0 0.0
    %2801 = vmatprep.subr.mxu0 0.0
    %2802 = vmatpush1.msra.mxu0 0.0
    %2803 = vmatprep.subr.mxu0 0.0
    %2804 = vmatpush1.msra.mxu0 0.0
    %2805 = vmatprep.subr.mxu0 0.0
    %2806 = vmatpush1.msra.mxu0 0.0
    %2807 = vmatprep.subr.mxu0 0.0
    %2808 = vmatpush1.msra.mxu0 0.0
    %2809 = vmatprep.subr.mxu0 0.0
    %2810 = vmatpush1.msra.mxu0 0.0
    %2811 = vmatprep.subr.mxu0 0.0
    %2812 = vmatpush1.msra.mxu0 0.0
    %2813 = vmatprep.subr.mxu0 0.0
    %2814 = vmatpush1.msra.mxu0 0.0
    %2815 = vmatprep.subr.mxu0 0.0
    %2816 = vmatpush1.msra.mxu0 0.0
    %2817 = vmatprep.subr.mxu0 0.0
    %2818 = vmatpush1.msra.mxu0 0.0
    %2819 = vmatprep.subr.mxu0 0.0
    %2820 = vmatpush1.msra.mxu0 0.0
    %2821 = vmatprep.subr.mxu0 0.0
    %2822 = vmatpush1.msra.mxu0 0.0
    %2823 = vmatprep.subr.mxu0 0.0
    %2824 = vmatpush1.msra.mxu0 0.0
    %2825 = vmatprep.subr.mxu0 0.0
    %2826 = vmatpush1.msra.mxu0 0.0
    %2827 = vmatprep.subr.mxu0 0.0
    %2828 = vmatpush1.msra.mxu0 0.0
    %2829 = vmatprep.subr.mxu0 0.0
    %2830 = vmatpush1.msra.mxu0 0.0
    %2831 = vmatprep.subr.mxu0 0.0
    %2832 = vmatpush1.msra.mxu0 0.0
    %2833 = vmatprep.subr.mxu0 0.0
    %2834 = vmatpush1.msra.mxu0 0.0
    %2835 = vmatprep.subr.mxu0 0.0
    %2836 = vmatpush1.msra.mxu0 0.0
    %2837 = vmatprep.subr.mxu0 0.0
    %2838 = vmatpush1.msra.mxu0 0.0
    %2839 = vmatprep.subr.mxu0 0.0
    %2840 = vmatpush1.msra.mxu0 0.0
    %2841 = vmatprep.subr.mxu0 0.0
    %2842 = vmatpush1.msra.mxu0 0.0
    %2843 = vmatprep.subr.mxu0 0.0
    %2844 = vmatpush1.msra.mxu0 0.0
    %2845 = vmatprep.mubr.f32.mxu0 0.0
    %2846 = vmatmul.mubr.f32.gmra.mrb[0].mxu0 %v2779
    %v2847 = vpop.f32.mrb[0].mxu0
    %v2848 = vadd.f32 %v2775, %v2847
    %v2849 = vpop.f32.mrb[0].mxu0
    %2850 = vdwg.mxu0
    %v2851 = vlaneseq
    %v2852 = vand.u32 %v2851, 127
    %v2853 = vlaneseq
    %v2854 = vshrl.u32 %v2853, 7
    %v2855 = vmul.f32 %v2600, %v2848
    %vm2856 = vcmask 687104
    %v2857 = vsel %vm2856, %v2855, 0.0
    %2858 = vadd.xlane.f32.xlu0 %v2857
    %v2859 = vpop.xlane.xlu0 %2858
    %vm2860 = vcmp.eq.s32.totalorder %v2852, 0
    %v2861 = vsel %vm2860, %v2859, 0.0
    %v2862 = vmul.f32 %v2601, %v2848
    %v2863 = vsel %vm2856, %v2862, 0.0
    %2864 = vadd.xlane.f32.xlu0 %v2863
    %v2865 = vpop.xlane.xlu0 %2864
    %vm2866 = vcmp.eq.s32.totalorder %v2852, 1
    %v2867 = vsel %vm2866, %v2865, %v2861
    %v2868 = vmul.f32 %v2602, %v2848
    %v2869 = vsel %vm2856, %v2868, 0.0
    %2870 = vadd.xlane.f32.xlu0 %v2869
    %v2871 = vpop.xlane.xlu0 %2870
    %vm2872 = vcmp.eq.s32.totalorder %v2852, 2
    %v2873 = vsel %vm2872, %v2871, %v2867
    %v2874 = vmul.f32 %v2603, %v2848
    %v2875 = vsel %vm2856, %v2874, 0.0
    %2876 = vadd.xlane.f32.xlu0 %v2875
    %v2877 = vpop.xlane.xlu0 %2876
    %vm2878 = vcmp.eq.s32.totalorder %v2852, 3
    %v2879 = vsel %vm2878, %v2877, %v2873
    %v2880 = vmul.f32 %v2604, %v2848
    %v2881 = vsel %vm2856, %v2880, 0.0
    %2882 = vadd.xlane.f32.xlu0 %v2881
    %v2883 = vpop.xlane.xlu0 %2882
    %vm2884 = vcmp.eq.s32.totalorder %v2852, 4
    %v2885 = vsel %vm2884, %v2883, %v2879
    %vm2886 = vcmp.lt.s32.totalorder %v2854, 4
    %v2887 = vsel %vm2886, %v2885, -1e+30
    %vm2888 = vcmask 39936
    %v2889 = vsel %vm2888, %v2887, -inf
    %v2890 = vrot.slane %v2889, 4
    %v2891 = vmax.f32 %v2889, %v2890
    %v2892 = vrot.slane %v2891, 2
    %v2893 = vmax.f32 %v2891, %v2892
    %v2894 = vrot.slane %v2893, 1
    %v2895 = vmax.f32 %v2893, %v2894
    %v2896 = vsub.f32 %v2887, %v2895
    %v2897 = vmul.f32 %v2896, 1.442695
    %v2898 = vpow.pop %v2897
    %v2899 = vsel %vm2888, %v2898, 0.0
    %v2900 = vrot.slane %v2899, 4
    %v2901 = vadd.f32 %v2899, %v2900
    %v2902 = vrot.slane %v2901, 2
    %v2903 = vadd.f32 %v2901, %v2902
    %v2904 = vrot.slane %v2903, 1
    %v2905 = vadd.f32 %v2903, %v2904
    %v2906 = vrcp.pop %v2905
    %v2907 = vmul.f32 %v2898, %v2906
    %vm2908 = vcmask 35840
    %2909 = vst.msk [vmem:[#allocation12] sm:$0xf] %vm2908, %v2907
    // Predicated region
    $region26: #{selfie_forward.2} parent=1 // pred_check
      _
    $region27: #{selfie_forward.2} parent=1 // pred_check_branch
      %2911 = sbr.rel (0) target = $region29
    $region28: #{selfie_forward.2} parent=1 // pred_region
      %s2913 = ssub.s32 64, 64
      %2914 = vsyncadd [#allocation13], %s2913
      %s2916 = sshll.u32 [#allocation12], 4
      %s2917 = int_to_ptr.vmem [resolvable:$true] %s2916
      %2919 = dma.vmem_to_hbm [thread:$0]  %s2917, 64, %s9, [#allocation13]
    $region29: #{selfie_forward.2} parent=1 // pred_fallthru
      _
    // Predicated region
    $region30: #{selfie_forward.2} parent=1 // pred_check
      _
    $region31: #{selfie_forward.2} parent=1 // pred_check_branch
      %2921 = sbr.rel (0) target = $region33
    $region32: #{selfie_forward.2} parent=1 // pred_region
      %2922 = dma.done [#allocation13], 64
    $region33: #{selfie_forward.2} parent=1 // pred_fallthru
      _
    %2923 = vsyncpa [#allocation13], 1

</llo_original>
